<compile_context>
chip_gen: v5e
topology: v5e:2x2
jax: 0.10.0
libtpu: 0.0.40
codegen_flags: <defaults>
</compile_context>

<pallas_src>
import functools

import jax
import jax.numpy as jnp
from jax.experimental import pallas as pl
from jax.experimental.pallas import tpu as pltpu


def _round_up(x, m):
    return -(-x // m) * m


def lstm_kernel(ids_ref, proj_ref, whh_ref, wout_ref, bout_ref, out_ref, gx_ref,
                *, seq_len, batch, batch_pad, gate_block):
    """Fused token-gather -> LSTM recurrence -> tanh/max-pool -> linear."""
    GB = gate_block          # lanes per gate block (>= 128); gates = 4 * GB
    Bp = batch_pad

    # ---- gather pre-projected inputs: gx[t*Bp + b] = proj[ids[t, b]] --------
    # proj already holds  embed @ W_ih^T + (b_ih + b_hh)  in the expanded
    # [i | f | o | g] lane-block layout, so no input GEMM is needed here.
    gx_ref[...] = jnp.zeros_like(gx_ref)          # padded batch rows stay zero
    for t in range(seq_len):
        for b in range(batch):
            tok = ids_ref[t, b]                   # scalar read from SMEM
            gx_ref[pl.ds(t * Bp + b, 1), :] = proj_ref[tok]   # (1, 4*GB) slab

    whh = whh_ref[...]                            # (GB, 4*GB), loaded once

    def gate_math(gates, c_prev, first_step):
        # gates: (Bp, 4*GB), block order [i | f | o | g]; the sigmoid gates
        # are lane-contiguous so one transcendental call covers i, f, o.
        sig = jax.nn.sigmoid(gates[:, 0:3 * GB])
        i_g = sig[:, 0:GB]
        f_g = sig[:, GB:2 * GB]
        o_g = sig[:, 2 * GB:3 * GB]
        g_g = jnp.tanh(gates[:, 3 * GB:4 * GB])
        c = i_g * g_g
        if not first_step:                        # peeled step: f * c_prev == 0
            c = f_g * c_prev + c
        h = o_g * jnp.tanh(c)
        return h, c

    # ---- peeled t = 0: h = c = 0 -> no recurrent matmul, m = h --------------
    h, c = gate_math(gx_ref[pl.ds(0, Bp), :], None, first_step=True)
    m = h

    # ---- remaining steps: fully unrolled, state carried in vregs ------------
    for t in range(1, seq_len):
        gates = gx_ref[pl.ds(t * Bp, Bp), :] + jnp.dot(
            h, whh, preferred_element_type=jnp.float32)
        h, c = gate_math(gates, c, first_step=False)
        m = jnp.maximum(m, h)            # max over raw h; tanh applied once below

    # ---- epilogue: F.tanh + max_pool1d result -> hidden2label linear --------
    feat = jnp.tanh(m)                   # meaningful lanes: [0, H)
    out_ref[...] = (jnp.dot(feat, wout_ref[...],
                            preferred_element_type=jnp.float32)
                    + bout_ref[...])


def _split_gates(w, hidden):
    # last axis is 4*hidden in PyTorch gate order [i, f, g, o]
    return [w[..., k * hidden:(k + 1) * hidden] for k in range(4)]


def prepare_params(params):
    """One-time parameter prep (hoisted out of the per-call forward).

    * embedding table pre-projected through W_ih^T with combined bias folded in
    * gate columns expanded so each gate owns a full 128-lane block, reordered
      to [i | f | o | g] so the sigmoid gates are lane-contiguous
    * recurrent / output weights zero-padded in rows so the kernel never has to
      lane-slice h; classes padded to a 128-lane multiple for an unmasked store
    """
    H = params["w_hh_t"].shape[0]
    C = params["w_out_t"].shape[1]
    GB = max(128, _round_up(H, 128))
    Cp = max(128, _round_up(C, 128))

    def expand(w):                       # (..., 4H) -> (..., 4*GB), [i|f|o|g]
        i_, f_, g_, o_ = _split_gates(w, H)
        pad = [(0, 0)] * (w.ndim - 1) + [(0, GB - H)]
        return jnp.concatenate([jnp.pad(x, pad) for x in (i_, f_, o_, g_)],
                               axis=-1)

    b_comb = params["b_ih"] + params["b_hh"]                      # (4H,)
    proj = (params["embed"].astype(jnp.float32) @ params["w_ih_t"]
            + b_comb[None, :])                                    # (V, 4H)
    proj_e = expand(proj)                                         # (V, 4GB)
    whh_e = expand(params["w_hh_t"])                              # (H, 4GB)

    V = proj_e.shape[0]
    return {
        "proj": proj_e.reshape(V, 1, 4 * GB),                     # (V, 1, 4GB)
        "whh":  jnp.pad(whh_e, ((0, GB - H), (0, 0))),            # (GB, 4GB)
        "wout": jnp.pad(params["w_out_t"],
                        ((0, GB - H), (0, Cp - C))),              # (GB, Cp)
        "bout": jnp.pad(params["b_out"], (0, Cp - C)).reshape(1, Cp),
    }


@functools.partial(jax.jit, static_argnames=("num_classes",))
def lstm_forward(tokens, prep, *, num_classes):
    S, B = tokens.shape
    GB = prep["proj"].shape[2] // 4
    Cp = prep["bout"].shape[1]
    Bp = max(8, _round_up(B, 8))          # f32 sublane multiple

    kernel = functools.partial(lstm_kernel, seq_len=S, batch=B,
                               batch_pad=Bp, gate_block=GB)

    smem = pl.BlockSpec(memory_space=pltpu.MemorySpace.SMEM)
    vmem = pl.BlockSpec(memory_space=pltpu.MemorySpace.VMEM)

    logits_p = pl.pallas_call(
        kernel,
        out_shape=jax.ShapeDtypeStruct((Bp, Cp), jnp.float32),
        in_specs=[smem, vmem, vmem, vmem, vmem],
        out_specs=vmem,
        scratch_shapes=[pltpu.VMEM((S * Bp, 4 * GB), jnp.float32)],
    )(tokens.astype(jnp.int32), prep["proj"], prep["whh"],
      prep["wout"], prep["bout"])

    return logits_p[:B, :num_classes]


def init_params(key, V, D, H, C):
    ks = jax.random.split(key, 7)
    scale = 1.0 / jnp.sqrt(H)
    return {
        "embed":   jax.random.normal(ks[0], (V, D), jnp.float32) * 0.1,
        # weights stored pre-transposed for (x @ W^T) matmuls, PyTorch gate
        # order [i, f, g, o] along the 4H axis
        "w_ih_t":  jax.random.uniform(ks[1], (D, 4 * H), jnp.float32, -scale, scale),
        "w_hh_t":  jax.random.uniform(ks[2], (H, 4 * H), jnp.float32, -scale, scale),
        "b_ih":    jax.random.uniform(ks[3], (4 * H,), jnp.float32, -scale, scale),
        "b_hh":    jax.random.uniform(ks[4], (4 * H,), jnp.float32, -scale, scale),
        "w_out_t": jax.random.uniform(ks[5], (H, C), jnp.float32, -scale, scale),
        "b_out":   jax.random.uniform(ks[6], (C,), jnp.float32, -scale, scale),
    }


if __name__ == "__main__":
    # small shapes consistent with the module's forward
    S, B = 8, 2          # seq_len, batch  (x is (S, B) token ids, seq-major)
    V, D = 50, 16        # embed_num, embed_dim
    H, C = 32, 4         # lstm_hidden_dim, class_num

    key = jax.random.PRNGKey(0)
    kp, kx = jax.random.split(key)
    params = init_params(kp, V, D, H, C)
    prep = prepare_params(params)        # one-time prep, hoisted out of forward
    tokens = jax.random.randint(kx, (S, B), 0, V, dtype=jnp.int32)

    logits = lstm_forward(tokens, prep, num_classes=C)
    jax.block_until_ready(logits)
    assert logits.shape == (B, C), logits.shape
    print("KERNEL_OK")
</pallas_src>

<mosaic_0001>
module attributes {stable_mosaic.version = 11 : i64} {
  func.func @lstm_kernel(%arg0: memref<8x2xi32, #tpu.memory_space<smem>>, %arg1: memref<50x1x512xf32, #tpu.memory_space<vmem>>, %arg2: memref<128x512xf32, #tpu.memory_space<vmem>>, %arg3: memref<128x128xf32, #tpu.memory_space<vmem>>, %arg4: memref<1x128xf32, #tpu.memory_space<vmem>>, %arg5: memref<8x128xf32, #tpu.memory_space<vmem>>, %arg6: memref<64x512xf32, #tpu.memory_space<vmem>>) attributes {dimension_semantics = [], scalar_prefetch = 0 : i64, scratch_operands = 1 : i64, tpu.core_type = #tpu.core_type<tc>} {
    %cst = arith.constant 0.000000e+00 : f32
    %0 = vector.broadcast %cst : f32 to vector<64x512xf32>
    %c0 = arith.constant 0 : index
    %c0_0 = arith.constant 0 : index
    %1 = vector.load %arg6[%c0, %c0_0] : memref<64x512xf32, #tpu.memory_space<vmem>>, vector<64x512xf32>
    tpu.vector_store %arg6[%c0, %c0_0], %0 {strides = array<i32>} : memref<64x512xf32, #tpu.memory_space<vmem>>, vector<64x512xf32>,
    %c0_1 = arith.constant 0 : index
    %c0_2 = arith.constant 0 : index
    %2 = memref.load %arg0[%c0_1, %c0_2] : memref<8x2xi32, #tpu.memory_space<smem>>
    %3 = arith.index_cast %2 : i32 to index
    %c0_3 = arith.constant 0 : index
    %c0_4 = arith.constant 0 : index
    %4 = vector.load %arg1[%3, %c0_3, %c0_4] : memref<50x1x512xf32, #tpu.memory_space<vmem>>, vector<1x1x512xf32>
    %5 = vector.shape_cast %4 : vector<1x1x512xf32> to vector<1x512xf32>
    %c0_5 = arith.constant 0 : index
    %c0_6 = arith.constant 0 : index
    %6 = vector.load %arg6[%c0_5, %c0_6] : memref<64x512xf32, #tpu.memory_space<vmem>>, vector<1x512xf32>
    tpu.vector_store %arg6[%c0_5, %c0_6], %5 {strides = array<i32>} : memref<64x512xf32, #tpu.memory_space<vmem>>, vector<1x512xf32>,
    %c0_7 = arith.constant 0 : index
    %c1 = arith.constant 1 : index
    %7 = memref.load %arg0[%c0_7, %c1] : memref<8x2xi32, #tpu.memory_space<smem>>
    %8 = arith.index_cast %7 : i32 to index
    %c0_8 = arith.constant 0 : index
    %c0_9 = arith.constant 0 : index
    %9 = vector.load %arg1[%8, %c0_8, %c0_9] : memref<50x1x512xf32, #tpu.memory_space<vmem>>, vector<1x1x512xf32>
    %10 = vector.shape_cast %9 : vector<1x1x512xf32> to vector<1x512xf32>
    %c1_10 = arith.constant 1 : index
    %c0_11 = arith.constant 0 : index
    %11 = vector.load %arg6[%c1_10, %c0_11] : memref<64x512xf32, #tpu.memory_space<vmem>>, vector<1x512xf32>
    tpu.vector_store %arg6[%c1_10, %c0_11], %10 {strides = array<i32>} : memref<64x512xf32, #tpu.memory_space<vmem>>, vector<1x512xf32>,
    %c1_12 = arith.constant 1 : index
    %c0_13 = arith.constant 0 : index
    %12 = memref.load %arg0[%c1_12, %c0_13] : memref<8x2xi32, #tpu.memory_space<smem>>
    %13 = arith.index_cast %12 : i32 to index
    %c0_14 = arith.constant 0 : index
    %c0_15 = arith.constant 0 : index
    %14 = vector.load %arg1[%13, %c0_14, %c0_15] : memref<50x1x512xf32, #tpu.memory_space<vmem>>, vector<1x1x512xf32>
    %15 = vector.shape_cast %14 : vector<1x1x512xf32> to vector<1x512xf32>
    %c8 = arith.constant 8 : index
    %c0_16 = arith.constant 0 : index
    %16 = vector.load %arg6[%c8, %c0_16] : memref<64x512xf32, #tpu.memory_space<vmem>>, vector<1x512xf32>
    tpu.vector_store %arg6[%c8, %c0_16], %15 {strides = array<i32>} : memref<64x512xf32, #tpu.memory_space<vmem>>, vector<1x512xf32>,
    %c1_17 = arith.constant 1 : index
    %c1_18 = arith.constant 1 : index
    %17 = memref.load %arg0[%c1_17, %c1_18] : memref<8x2xi32, #tpu.memory_space<smem>>
    %18 = arith.index_cast %17 : i32 to index
    %c0_19 = arith.constant 0 : index
    %c0_20 = arith.constant 0 : index
    %19 = vector.load %arg1[%18, %c0_19, %c0_20] : memref<50x1x512xf32, #tpu.memory_space<vmem>>, vector<1x1x512xf32>
    %20 = vector.shape_cast %19 : vector<1x1x512xf32> to vector<1x512xf32>
    %c9 = arith.constant 9 : index
    %c0_21 = arith.constant 0 : index
    %21 = vector.load %arg6[%c9, %c0_21] : memref<64x512xf32, #tpu.memory_space<vmem>>, vector<1x512xf32>
    tpu.vector_store %arg6[%c9, %c0_21], %20 {strides = array<i32>} : memref<64x512xf32, #tpu.memory_space<vmem>>, vector<1x512xf32>,
    %c2 = arith.constant 2 : index
    %c0_22 = arith.constant 0 : index
    %22 = memref.load %arg0[%c2, %c0_22] : memref<8x2xi32, #tpu.memory_space<smem>>
    %23 = arith.index_cast %22 : i32 to index
    %c0_23 = arith.constant 0 : index
    %c0_24 = arith.constant 0 : index
    %24 = vector.load %arg1[%23, %c0_23, %c0_24] : memref<50x1x512xf32, #tpu.memory_space<vmem>>, vector<1x1x512xf32>
    %25 = vector.shape_cast %24 : vector<1x1x512xf32> to vector<1x512xf32>
    %c16 = arith.constant 16 : index
    %c0_25 = arith.constant 0 : index
    %26 = vector.load %arg6[%c16, %c0_25] : memref<64x512xf32, #tpu.memory_space<vmem>>, vector<1x512xf32>
    tpu.vector_store %arg6[%c16, %c0_25], %25 {strides = array<i32>} : memref<64x512xf32, #tpu.memory_space<vmem>>, vector<1x512xf32>,
    %c2_26 = arith.constant 2 : index
    %c1_27 = arith.constant 1 : index
    %27 = memref.load %arg0[%c2_26, %c1_27] : memref<8x2xi32, #tpu.memory_space<smem>>
    %28 = arith.index_cast %27 : i32 to index
    %c0_28 = arith.constant 0 : index
    %c0_29 = arith.constant 0 : index
    %29 = vector.load %arg1[%28, %c0_28, %c0_29] : memref<50x1x512xf32, #tpu.memory_space<vmem>>, vector<1x1x512xf32>
    %30 = vector.shape_cast %29 : vector<1x1x512xf32> to vector<1x512xf32>
    %c17 = arith.constant 17 : index
    %c0_30 = arith.constant 0 : index
    %31 = vector.load %arg6[%c17, %c0_30] : memref<64x512xf32, #tpu.memory_space<vmem>>, vector<1x512xf32>
    tpu.vector_store %arg6[%c17, %c0_30], %30 {strides = array<i32>} : memref<64x512xf32, #tpu.memory_space<vmem>>, vector<1x512xf32>,
    %c3 = arith.constant 3 : index
    %c0_31 = arith.constant 0 : index
    %32 = memref.load %arg0[%c3, %c0_31] : memref<8x2xi32, #tpu.memory_space<smem>>
    %33 = arith.index_cast %32 : i32 to index
    %c0_32 = arith.constant 0 : index
    %c0_33 = arith.constant 0 : index
    %34 = vector.load %arg1[%33, %c0_32, %c0_33] : memref<50x1x512xf32, #tpu.memory_space<vmem>>, vector<1x1x512xf32>
    %35 = vector.shape_cast %34 : vector<1x1x512xf32> to vector<1x512xf32>
    %c24 = arith.constant 24 : index
    %c0_34 = arith.constant 0 : index
    %36 = vector.load %arg6[%c24, %c0_34] : memref<64x512xf32, #tpu.memory_space<vmem>>, vector<1x512xf32>
    tpu.vector_store %arg6[%c24, %c0_34], %35 {strides = array<i32>} : memref<64x512xf32, #tpu.memory_space<vmem>>, vector<1x512xf32>,
    %c3_35 = arith.constant 3 : index
    %c1_36 = arith.constant 1 : index
    %37 = memref.load %arg0[%c3_35, %c1_36] : memref<8x2xi32, #tpu.memory_space<smem>>
    %38 = arith.index_cast %37 : i32 to index
    %c0_37 = arith.constant 0 : index
    %c0_38 = arith.constant 0 : index
    %39 = vector.load %arg1[%38, %c0_37, %c0_38] : memref<50x1x512xf32, #tpu.memory_space<vmem>>, vector<1x1x512xf32>
    %40 = vector.shape_cast %39 : vector<1x1x512xf32> to vector<1x512xf32>
    %c25 = arith.constant 25 : index
    %c0_39 = arith.constant 0 : index
    %41 = vector.load %arg6[%c25, %c0_39] : memref<64x512xf32, #tpu.memory_space<vmem>>, vector<1x512xf32>
    tpu.vector_store %arg6[%c25, %c0_39], %40 {strides = array<i32>} : memref<64x512xf32, #tpu.memory_space<vmem>>, vector<1x512xf32>,
    %c4 = arith.constant 4 : index
    %c0_40 = arith.constant 0 : index
    %42 = memref.load %arg0[%c4, %c0_40] : memref<8x2xi32, #tpu.memory_space<smem>>
    %43 = arith.index_cast %42 : i32 to index
    %c0_41 = arith.constant 0 : index
    %c0_42 = arith.constant 0 : index
    %44 = vector.load %arg1[%43, %c0_41, %c0_42] : memref<50x1x512xf32, #tpu.memory_space<vmem>>, vector<1x1x512xf32>
    %45 = vector.shape_cast %44 : vector<1x1x512xf32> to vector<1x512xf32>
    %c32 = arith.constant 32 : index
    %c0_43 = arith.constant 0 : index
    %46 = vector.load %arg6[%c32, %c0_43] : memref<64x512xf32, #tpu.memory_space<vmem>>, vector<1x512xf32>
    tpu.vector_store %arg6[%c32, %c0_43], %45 {strides = array<i32>} : memref<64x512xf32, #tpu.memory_space<vmem>>, vector<1x512xf32>,
    %c4_44 = arith.constant 4 : index
    %c1_45 = arith.constant 1 : index
    %47 = memref.load %arg0[%c4_44, %c1_45] : memref<8x2xi32, #tpu.memory_space<smem>>
    %48 = arith.index_cast %47 : i32 to index
    %c0_46 = arith.constant 0 : index
    %c0_47 = arith.constant 0 : index
    %49 = vector.load %arg1[%48, %c0_46, %c0_47] : memref<50x1x512xf32, #tpu.memory_space<vmem>>, vector<1x1x512xf32>
    %50 = vector.shape_cast %49 : vector<1x1x512xf32> to vector<1x512xf32>
    %c33 = arith.constant 33 : index
    %c0_48 = arith.constant 0 : index
    %51 = vector.load %arg6[%c33, %c0_48] : memref<64x512xf32, #tpu.memory_space<vmem>>, vector<1x512xf32>
    tpu.vector_store %arg6[%c33, %c0_48], %50 {strides = array<i32>} : memref<64x512xf32, #tpu.memory_space<vmem>>, vector<1x512xf32>,
    %c5 = arith.constant 5 : index
    %c0_49 = arith.constant 0 : index
    %52 = memref.load %arg0[%c5, %c0_49] : memref<8x2xi32, #tpu.memory_space<smem>>
    %53 = arith.index_cast %52 : i32 to index
    %c0_50 = arith.constant 0 : index
    %c0_51 = arith.constant 0 : index
    %54 = vector.load %arg1[%53, %c0_50, %c0_51] : memref<50x1x512xf32, #tpu.memory_space<vmem>>, vector<1x1x512xf32>
    %55 = vector.shape_cast %54 : vector<1x1x512xf32> to vector<1x512xf32>
    %c40 = arith.constant 40 : index
    %c0_52 = arith.constant 0 : index
    %56 = vector.load %arg6[%c40, %c0_52] : memref<64x512xf32, #tpu.memory_space<vmem>>, vector<1x512xf32>
    tpu.vector_store %arg6[%c40, %c0_52], %55 {strides = array<i32>} : memref<64x512xf32, #tpu.memory_space<vmem>>, vector<1x512xf32>,
    %c5_53 = arith.constant 5 : index
    %c1_54 = arith.constant 1 : index
    %57 = memref.load %arg0[%c5_53, %c1_54] : memref<8x2xi32, #tpu.memory_space<smem>>
    %58 = arith.index_cast %57 : i32 to index
    %c0_55 = arith.constant 0 : index
    %c0_56 = arith.constant 0 : index
    %59 = vector.load %arg1[%58, %c0_55, %c0_56] : memref<50x1x512xf32, #tpu.memory_space<vmem>>, vector<1x1x512xf32>
    %60 = vector.shape_cast %59 : vector<1x1x512xf32> to vector<1x512xf32>
    %c41 = arith.constant 41 : index
    %c0_57 = arith.constant 0 : index
    %61 = vector.load %arg6[%c41, %c0_57] : memref<64x512xf32, #tpu.memory_space<vmem>>, vector<1x512xf32>
    tpu.vector_store %arg6[%c41, %c0_57], %60 {strides = array<i32>} : memref<64x512xf32, #tpu.memory_space<vmem>>, vector<1x512xf32>,
    %c6 = arith.constant 6 : index
    %c0_58 = arith.constant 0 : index
    %62 = memref.load %arg0[%c6, %c0_58] : memref<8x2xi32, #tpu.memory_space<smem>>
    %63 = arith.index_cast %62 : i32 to index
    %c0_59 = arith.constant 0 : index
    %c0_60 = arith.constant 0 : index
    %64 = vector.load %arg1[%63, %c0_59, %c0_60] : memref<50x1x512xf32, #tpu.memory_space<vmem>>, vector<1x1x512xf32>
    %65 = vector.shape_cast %64 : vector<1x1x512xf32> to vector<1x512xf32>
    %c48 = arith.constant 48 : index
    %c0_61 = arith.constant 0 : index
    %66 = vector.load %arg6[%c48, %c0_61] : memref<64x512xf32, #tpu.memory_space<vmem>>, vector<1x512xf32>
    tpu.vector_store %arg6[%c48, %c0_61], %65 {strides = array<i32>} : memref<64x512xf32, #tpu.memory_space<vmem>>, vector<1x512xf32>,
    %c6_62 = arith.constant 6 : index
    %c1_63 = arith.constant 1 : index
    %67 = memref.load %arg0[%c6_62, %c1_63] : memref<8x2xi32, #tpu.memory_space<smem>>
    %68 = arith.index_cast %67 : i32 to index
    %c0_64 = arith.constant 0 : index
    %c0_65 = arith.constant 0 : index
    %69 = vector.load %arg1[%68, %c0_64, %c0_65] : memref<50x1x512xf32, #tpu.memory_space<vmem>>, vector<1x1x512xf32>
    %70 = vector.shape_cast %69 : vector<1x1x512xf32> to vector<1x512xf32>
    %c49 = arith.constant 49 : index
    %c0_66 = arith.constant 0 : index
    %71 = vector.load %arg6[%c49, %c0_66] : memref<64x512xf32, #tpu.memory_space<vmem>>, vector<1x512xf32>
    tpu.vector_store %arg6[%c49, %c0_66], %70 {strides = array<i32>} : memref<64x512xf32, #tpu.memory_space<vmem>>, vector<1x512xf32>,
    %c7 = arith.constant 7 : index
    %c0_67 = arith.constant 0 : index
    %72 = memref.load %arg0[%c7, %c0_67] : memref<8x2xi32, #tpu.memory_space<smem>>
    %73 = arith.index_cast %72 : i32 to index
    %c0_68 = arith.constant 0 : index
    %c0_69 = arith.constant 0 : index
    %74 = vector.load %arg1[%73, %c0_68, %c0_69] : memref<50x1x512xf32, #tpu.memory_space<vmem>>, vector<1x1x512xf32>
    %75 = vector.shape_cast %74 : vector<1x1x512xf32> to vector<1x512xf32>
    %c56 = arith.constant 56 : index
    %c0_70 = arith.constant 0 : index
    %76 = vector.load %arg6[%c56, %c0_70] : memref<64x512xf32, #tpu.memory_space<vmem>>, vector<1x512xf32>
    tpu.vector_store %arg6[%c56, %c0_70], %75 {strides = array<i32>} : memref<64x512xf32, #tpu.memory_space<vmem>>, vector<1x512xf32>,
    %c7_71 = arith.constant 7 : index
    %c1_72 = arith.constant 1 : index
    %77 = memref.load %arg0[%c7_71, %c1_72] : memref<8x2xi32, #tpu.memory_space<smem>>
    %78 = arith.index_cast %77 : i32 to index
    %c0_73 = arith.constant 0 : index
    %c0_74 = arith.constant 0 : index
    %79 = vector.load %arg1[%78, %c0_73, %c0_74] : memref<50x1x512xf32, #tpu.memory_space<vmem>>, vector<1x1x512xf32>
    %80 = vector.shape_cast %79 : vector<1x1x512xf32> to vector<1x512xf32>
    %c57 = arith.constant 57 : index
    %c0_75 = arith.constant 0 : index
    %81 = vector.load %arg6[%c57, %c0_75] : memref<64x512xf32, #tpu.memory_space<vmem>>, vector<1x512xf32>
    tpu.vector_store %arg6[%c57, %c0_75], %80 {strides = array<i32>} : memref<64x512xf32, #tpu.memory_space<vmem>>, vector<1x512xf32>,
    %c0_76 = arith.constant 0 : index
    %c0_77 = arith.constant 0 : index
    %82 = vector.load %arg2[%c0_76, %c0_77] : memref<128x512xf32, #tpu.memory_space<vmem>>, vector<128x512xf32>
    %c0_78 = arith.constant 0 : index
    %c0_79 = arith.constant 0 : index
    %83 = vector.load %arg6[%c0_78, %c0_79] : memref<64x512xf32, #tpu.memory_space<vmem>>, vector<8x512xf32>
    %84 = vector.extract_strided_slice %83 {offsets = [0, 0], sizes = [8, 384], strides = [1, 1]} : vector<8x512xf32> to vector<8x384xf32>
    %85 = arith.negf %84 : vector<8x384xf32>
    %86 = math.exp %85 : vector<8x384xf32>
    %cst_80 = arith.constant 1.000000e+00 : f32
    %87 = vector.broadcast %cst_80 : f32 to vector<8x384xf32>
    %88 = arith.addf %87, %86 : vector<8x384xf32>
    %89 = arith.divf %87, %88 : vector<8x384xf32>
    %90 = vector.extract_strided_slice %89 {offsets = [0, 0], sizes = [8, 128], strides = [1, 1]} : vector<8x384xf32> to vector<8x128xf32>
    %91 = vector.extract_strided_slice %89 {offsets = [0, 256], sizes = [8, 128], strides = [1, 1]} : vector<8x384xf32> to vector<8x128xf32>
    %92 = vector.extract_strided_slice %83 {offsets = [0, 384], sizes = [8, 128], strides = [1, 1]} : vector<8x512xf32> to vector<8x128xf32>
    %93 = math.tanh %92 : vector<8x128xf32>
    %94 = arith.mulf %90, %93 : vector<8x128xf32>
    %95 = math.tanh %94 : vector<8x128xf32>
    %96 = arith.mulf %91, %95 : vector<8x128xf32>
    %c8_81 = arith.constant 8 : index
    %c0_82 = arith.constant 0 : index
    %97 = vector.load %arg6[%c8_81, %c0_82] : memref<64x512xf32, #tpu.memory_space<vmem>>, vector<8x512xf32>
    %cst_83 = arith.constant dense<0.000000e+00> : vector<8x512xf32>
    %98 = tpu.matmul %96, %82, %cst_83 {dimension_numbers = #tpu.dot_dimension_numbers<[1], [0], [0], [1], [0, 0, 1, 1], [], []>} : vector<8x128xf32>, vector<128x512xf32>, vector<8x512xf32> -> vector<8x512xf32>
    %99 = arith.addf %97, %98 : vector<8x512xf32>
    %100 = vector.extract_strided_slice %99 {offsets = [0, 0], sizes = [8, 384], strides = [1, 1]} : vector<8x512xf32> to vector<8x384xf32>
    %101 = arith.negf %100 : vector<8x384xf32>
    %102 = math.exp %101 : vector<8x384xf32>
    %cst_84 = arith.constant 1.000000e+00 : f32
    %103 = vector.broadcast %cst_84 : f32 to vector<8x384xf32>
    %104 = arith.addf %103, %102 : vector<8x384xf32>
    %105 = arith.divf %103, %104 : vector<8x384xf32>
    %106 = vector.extract_strided_slice %105 {offsets = [0, 0], sizes = [8, 128], strides = [1, 1]} : vector<8x384xf32> to vector<8x128xf32>
    %107 = vector.extract_strided_slice %105 {offsets = [0, 128], sizes = [8, 128], strides = [1, 1]} : vector<8x384xf32> to vector<8x128xf32>
    %108 = vector.extract_strided_slice %105 {offsets = [0, 256], sizes = [8, 128], strides = [1, 1]} : vector<8x384xf32> to vector<8x128xf32>
    %109 = vector.extract_strided_slice %99 {offsets = [0, 384], sizes = [8, 128], strides = [1, 1]} : vector<8x512xf32> to vector<8x128xf32>
    %110 = math.tanh %109 : vector<8x128xf32>
    %111 = arith.mulf %106, %110 : vector<8x128xf32>
    %112 = arith.mulf %107, %94 : vector<8x128xf32>
    %113 = arith.addf %112, %111 : vector<8x128xf32>
    %114 = math.tanh %113 : vector<8x128xf32>
    %115 = arith.mulf %108, %114 : vector<8x128xf32>
    %116 = arith.maximumf %96, %115 : vector<8x128xf32>
    %c16_85 = arith.constant 16 : index
    %c0_86 = arith.constant 0 : index
    %117 = vector.load %arg6[%c16_85, %c0_86] : memref<64x512xf32, #tpu.memory_space<vmem>>, vector<8x512xf32>
    %cst_87 = arith.constant dense<0.000000e+00> : vector<8x512xf32>
    %118 = tpu.matmul %115, %82, %cst_87 {dimension_numbers = #tpu.dot_dimension_numbers<[1], [0], [0], [1], [0, 0, 1, 1], [], []>} : vector<8x128xf32>, vector<128x512xf32>, vector<8x512xf32> -> vector<8x512xf32>
    %119 = arith.addf %117, %118 : vector<8x512xf32>
    %120 = vector.extract_strided_slice %119 {offsets = [0, 0], sizes = [8, 384], strides = [1, 1]} : vector<8x512xf32> to vector<8x384xf32>
    %121 = arith.negf %120 : vector<8x384xf32>
    %122 = math.exp %121 : vector<8x384xf32>
    %cst_88 = arith.constant 1.000000e+00 : f32
    %123 = vector.broadcast %cst_88 : f32 to vector<8x384xf32>
    %124 = arith.addf %123, %122 : vector<8x384xf32>
    %125 = arith.divf %123, %124 : vector<8x384xf32>
    %126 = vector.extract_strided_slice %125 {offsets = [0, 0], sizes = [8, 128], strides = [1, 1]} : vector<8x384xf32> to vector<8x128xf32>
    %127 = vector.extract_strided_slice %125 {offsets = [0, 128], sizes = [8, 128], strides = [1, 1]} : vector<8x384xf32> to vector<8x128xf32>
    %128 = vector.extract_strided_slice %125 {offsets = [0, 256], sizes = [8, 128], strides = [1, 1]} : vector<8x384xf32> to vector<8x128xf32>
    %129 = vector.extract_strided_slice %119 {offsets = [0, 384], sizes = [8, 128], strides = [1, 1]} : vector<8x512xf32> to vector<8x128xf32>
    %130 = math.tanh %129 : vector<8x128xf32>
    %131 = arith.mulf %126, %130 : vector<8x128xf32>
    %132 = arith.mulf %127, %113 : vector<8x128xf32>
    %133 = arith.addf %132, %131 : vector<8x128xf32>
    %134 = math.tanh %133 : vector<8x128xf32>
    %135 = arith.mulf %128, %134 : vector<8x128xf32>
    %136 = arith.maximumf %116, %135 : vector<8x128xf32>
    %c24_89 = arith.constant 24 : index
    %c0_90 = arith.constant 0 : index
    %137 = vector.load %arg6[%c24_89, %c0_90] : memref<64x512xf32, #tpu.memory_space<vmem>>, vector<8x512xf32>
    %cst_91 = arith.constant dense<0.000000e+00> : vector<8x512xf32>
    %138 = tpu.matmul %135, %82, %cst_91 {dimension_numbers = #tpu.dot_dimension_numbers<[1], [0], [0], [1], [0, 0, 1, 1], [], []>} : vector<8x128xf32>, vector<128x512xf32>, vector<8x512xf32> -> vector<8x512xf32>
    %139 = arith.addf %137, %138 : vector<8x512xf32>
    %140 = vector.extract_strided_slice %139 {offsets = [0, 0], sizes = [8, 384], strides = [1, 1]} : vector<8x512xf32> to vector<8x384xf32>
    %141 = arith.negf %140 : vector<8x384xf32>
    %142 = math.exp %141 : vector<8x384xf32>
    %cst_92 = arith.constant 1.000000e+00 : f32
    %143 = vector.broadcast %cst_92 : f32 to vector<8x384xf32>
    %144 = arith.addf %143, %142 : vector<8x384xf32>
    %145 = arith.divf %143, %144 : vector<8x384xf32>
    %146 = vector.extract_strided_slice %145 {offsets = [0, 0], sizes = [8, 128], strides = [1, 1]} : vector<8x384xf32> to vector<8x128xf32>
    %147 = vector.extract_strided_slice %145 {offsets = [0, 128], sizes = [8, 128], strides = [1, 1]} : vector<8x384xf32> to vector<8x128xf32>
    %148 = vector.extract_strided_slice %145 {offsets = [0, 256], sizes = [8, 128], strides = [1, 1]} : vector<8x384xf32> to vector<8x128xf32>
    %149 = vector.extract_strided_slice %139 {offsets = [0, 384], sizes = [8, 128], strides = [1, 1]} : vector<8x512xf32> to vector<8x128xf32>
    %150 = math.tanh %149 : vector<8x128xf32>
    %151 = arith.mulf %146, %150 : vector<8x128xf32>
    %152 = arith.mulf %147, %133 : vector<8x128xf32>
    %153 = arith.addf %152, %151 : vector<8x128xf32>
    %154 = math.tanh %153 : vector<8x128xf32>
    %155 = arith.mulf %148, %154 : vector<8x128xf32>
    %156 = arith.maximumf %136, %155 : vector<8x128xf32>
    %c32_93 = arith.constant 32 : index
    %c0_94 = arith.constant 0 : index
    %157 = vector.load %arg6[%c32_93, %c0_94] : memref<64x512xf32, #tpu.memory_space<vmem>>, vector<8x512xf32>
    %cst_95 = arith.constant dense<0.000000e+00> : vector<8x512xf32>
    %158 = tpu.matmul %155, %82, %cst_95 {dimension_numbers = #tpu.dot_dimension_numbers<[1], [0], [0], [1], [0, 0, 1, 1], [], []>} : vector<8x128xf32>, vector<128x512xf32>, vector<8x512xf32> -> vector<8x512xf32>
    %159 = arith.addf %157, %158 : vector<8x512xf32>
    %160 = vector.extract_strided_slice %159 {offsets = [0, 0], sizes = [8, 384], strides = [1, 1]} : vector<8x512xf32> to vector<8x384xf32>
    %161 = arith.negf %160 : vector<8x384xf32>
    %162 = math.exp %161 : vector<8x384xf32>
    %cst_96 = arith.constant 1.000000e+00 : f32
    %163 = vector.broadcast %cst_96 : f32 to vector<8x384xf32>
    %164 = arith.addf %163, %162 : vector<8x384xf32>
    %165 = arith.divf %163, %164 : vector<8x384xf32>
    %166 = vector.extract_strided_slice %165 {offsets = [0, 0], sizes = [8, 128], strides = [1, 1]} : vector<8x384xf32> to vector<8x128xf32>
    %167 = vector.extract_strided_slice %165 {offsets = [0, 128], sizes = [8, 128], strides = [1, 1]} : vector<8x384xf32> to vector<8x128xf32>
    %168 = vector.extract_strided_slice %165 {offsets = [0, 256], sizes = [8, 128], strides = [1, 1]} : vector<8x384xf32> to vector<8x128xf32>
    %169 = vector.extract_strided_slice %159 {offsets = [0, 384], sizes = [8, 128], strides = [1, 1]} : vector<8x512xf32> to vector<8x128xf32>
    %170 = math.tanh %169 : vector<8x128xf32>
    %171 = arith.mulf %166, %170 : vector<8x128xf32>
    %172 = arith.mulf %167, %153 : vector<8x128xf32>
    %173 = arith.addf %172, %171 : vector<8x128xf32>
    %174 = math.tanh %173 : vector<8x128xf32>
    %175 = arith.mulf %168, %174 : vector<8x128xf32>
    %176 = arith.maximumf %156, %175 : vector<8x128xf32>
    %c40_97 = arith.constant 40 : index
    %c0_98 = arith.constant 0 : index
    %177 = vector.load %arg6[%c40_97, %c0_98] : memref<64x512xf32, #tpu.memory_space<vmem>>, vector<8x512xf32>
    %cst_99 = arith.constant dense<0.000000e+00> : vector<8x512xf32>
    %178 = tpu.matmul %175, %82, %cst_99 {dimension_numbers = #tpu.dot_dimension_numbers<[1], [0], [0], [1], [0, 0, 1, 1], [], []>} : vector<8x128xf32>, vector<128x512xf32>, vector<8x512xf32> -> vector<8x512xf32>
    %179 = arith.addf %177, %178 : vector<8x512xf32>
    %180 = vector.extract_strided_slice %179 {offsets = [0, 0], sizes = [8, 384], strides = [1, 1]} : vector<8x512xf32> to vector<8x384xf32>
    %181 = arith.negf %180 : vector<8x384xf32>
    %182 = math.exp %181 : vector<8x384xf32>
    %cst_100 = arith.constant 1.000000e+00 : f32
    %183 = vector.broadcast %cst_100 : f32 to vector<8x384xf32>
    %184 = arith.addf %183, %182 : vector<8x384xf32>
    %185 = arith.divf %183, %184 : vector<8x384xf32>
    %186 = vector.extract_strided_slice %185 {offsets = [0, 0], sizes = [8, 128], strides = [1, 1]} : vector<8x384xf32> to vector<8x128xf32>
    %187 = vector.extract_strided_slice %185 {offsets = [0, 128], sizes = [8, 128], strides = [1, 1]} : vector<8x384xf32> to vector<8x128xf32>
    %188 = vector.extract_strided_slice %185 {offsets = [0, 256], sizes = [8, 128], strides = [1, 1]} : vector<8x384xf32> to vector<8x128xf32>
    %189 = vector.extract_strided_slice %179 {offsets = [0, 384], sizes = [8, 128], strides = [1, 1]} : vector<8x512xf32> to vector<8x128xf32>
    %190 = math.tanh %189 : vector<8x128xf32>
    %191 = arith.mulf %186, %190 : vector<8x128xf32>
    %192 = arith.mulf %187, %173 : vector<8x128xf32>
    %193 = arith.addf %192, %191 : vector<8x128xf32>
    %194 = math.tanh %193 : vector<8x128xf32>
    %195 = arith.mulf %188, %194 : vector<8x128xf32>
    %196 = arith.maximumf %176, %195 : vector<8x128xf32>
    %c48_101 = arith.constant 48 : index
    %c0_102 = arith.constant 0 : index
    %197 = vector.load %arg6[%c48_101, %c0_102] : memref<64x512xf32, #tpu.memory_space<vmem>>, vector<8x512xf32>
    %cst_103 = arith.constant dense<0.000000e+00> : vector<8x512xf32>
    %198 = tpu.matmul %195, %82, %cst_103 {dimension_numbers = #tpu.dot_dimension_numbers<[1], [0], [0], [1], [0, 0, 1, 1], [], []>} : vector<8x128xf32>, vector<128x512xf32>, vector<8x512xf32> -> vector<8x512xf32>
    %199 = arith.addf %197, %198 : vector<8x512xf32>
    %200 = vector.extract_strided_slice %199 {offsets = [0, 0], sizes = [8, 384], strides = [1, 1]} : vector<8x512xf32> to vector<8x384xf32>
    %201 = arith.negf %200 : vector<8x384xf32>
    %202 = math.exp %201 : vector<8x384xf32>
    %cst_104 = arith.constant 1.000000e+00 : f32
    %203 = vector.broadcast %cst_104 : f32 to vector<8x384xf32>
    %204 = arith.addf %203, %202 : vector<8x384xf32>
    %205 = arith.divf %203, %204 : vector<8x384xf32>
    %206 = vector.extract_strided_slice %205 {offsets = [0, 0], sizes = [8, 128], strides = [1, 1]} : vector<8x384xf32> to vector<8x128xf32>
    %207 = vector.extract_strided_slice %205 {offsets = [0, 128], sizes = [8, 128], strides = [1, 1]} : vector<8x384xf32> to vector<8x128xf32>
    %208 = vector.extract_strided_slice %205 {offsets = [0, 256], sizes = [8, 128], strides = [1, 1]} : vector<8x384xf32> to vector<8x128xf32>
    %209 = vector.extract_strided_slice %199 {offsets = [0, 384], sizes = [8, 128], strides = [1, 1]} : vector<8x512xf32> to vector<8x128xf32>
    %210 = math.tanh %209 : vector<8x128xf32>
    %211 = arith.mulf %206, %210 : vector<8x128xf32>
    %212 = arith.mulf %207, %193 : vector<8x128xf32>
    %213 = arith.addf %212, %211 : vector<8x128xf32>
    %214 = math.tanh %213 : vector<8x128xf32>
    %215 = arith.mulf %208, %214 : vector<8x128xf32>
    %216 = arith.maximumf %196, %215 : vector<8x128xf32>
    %c56_105 = arith.constant 56 : index
    %c0_106 = arith.constant 0 : index
    %217 = vector.load %arg6[%c56_105, %c0_106] : memref<64x512xf32, #tpu.memory_space<vmem>>, vector<8x512xf32>
    %cst_107 = arith.constant dense<0.000000e+00> : vector<8x512xf32>
    %218 = tpu.matmul %215, %82, %cst_107 {dimension_numbers = #tpu.dot_dimension_numbers<[1], [0], [0], [1], [0, 0, 1, 1], [], []>} : vector<8x128xf32>, vector<128x512xf32>, vector<8x512xf32> -> vector<8x512xf32>
    %219 = arith.addf %217, %218 : vector<8x512xf32>
    %220 = vector.extract_strided_slice %219 {offsets = [0, 0], sizes = [8, 384], strides = [1, 1]} : vector<8x512xf32> to vector<8x384xf32>
    %221 = arith.negf %220 : vector<8x384xf32>
    %222 = math.exp %221 : vector<8x384xf32>
    %cst_108 = arith.constant 1.000000e+00 : f32
    %223 = vector.broadcast %cst_108 : f32 to vector<8x384xf32>
    %224 = arith.addf %223, %222 : vector<8x384xf32>
    %225 = arith.divf %223, %224 : vector<8x384xf32>
    %226 = vector.extract_strided_slice %225 {offsets = [0, 0], sizes = [8, 128], strides = [1, 1]} : vector<8x384xf32> to vector<8x128xf32>
    %227 = vector.extract_strided_slice %225 {offsets = [0, 128], sizes = [8, 128], strides = [1, 1]} : vector<8x384xf32> to vector<8x128xf32>
    %228 = vector.extract_strided_slice %225 {offsets = [0, 256], sizes = [8, 128], strides = [1, 1]} : vector<8x384xf32> to vector<8x128xf32>
    %229 = vector.extract_strided_slice %219 {offsets = [0, 384], sizes = [8, 128], strides = [1, 1]} : vector<8x512xf32> to vector<8x128xf32>
    %230 = math.tanh %229 : vector<8x128xf32>
    %231 = arith.mulf %226, %230 : vector<8x128xf32>
    %232 = arith.mulf %227, %213 : vector<8x128xf32>
    %233 = arith.addf %232, %231 : vector<8x128xf32>
    %234 = math.tanh %233 : vector<8x128xf32>
    %235 = arith.mulf %228, %234 : vector<8x128xf32>
    %236 = arith.maximumf %216, %235 : vector<8x128xf32>
    %237 = math.tanh %236 : vector<8x128xf32>
    %c0_109 = arith.constant 0 : index
    %c0_110 = arith.constant 0 : index
    %238 = vector.load %arg3[%c0_109, %c0_110] : memref<128x128xf32, #tpu.memory_space<vmem>>, vector<128x128xf32>
    %cst_111 = arith.constant dense<0.000000e+00> : vector<8x128xf32>
    %239 = tpu.matmul %237, %238, %cst_111 {dimension_numbers = #tpu.dot_dimension_numbers<[1], [0], [0], [1], [0, 0, 1, 1], [], []>} : vector<8x128xf32>, vector<128x128xf32>, vector<8x128xf32> -> vector<8x128xf32>
    %c0_112 = arith.constant 0 : index
    %c0_113 = arith.constant 0 : index
    %240 = vector.load %arg4[%c0_112, %c0_113] : memref<1x128xf32, #tpu.memory_space<vmem>>, vector<1x128xf32>
    %241 = vector.broadcast %240 : vector<1x128xf32> to vector<8x128xf32>
    %242 = arith.addf %239, %241 : vector<8x128xf32>
    %c0_114 = arith.constant 0 : index
    %c0_115 = arith.constant 0 : index
    %243 = vector.load %arg5[%c0_114, %c0_115] : memref<8x128xf32, #tpu.memory_space<vmem>>, vector<8x128xf32>
    tpu.vector_store %arg5[%c0_114, %c0_115], %242 {strides = array<i32>} : memref<8x128xf32, #tpu.memory_space<vmem>>, vector<8x128xf32>,
    return
  }
}

</mosaic_0001>

<llo_original>
// kernel: lstm_forward.1
$region0: #{lstm_forward.1}
  #allocation0 [shape = 'u32[]', space=smem, size = 0x4, offset = 0x4, fixed_abs, tag = 'smem constant byte address 0x4 - core index']
  #allocation1 [shape = 'u32[72,128]{1,0:T(1,128)}', space=vmem, size = 0x9000, scoped, tag = 'internal scratch']
  #allocation2 [shape = 'f32[64,512]{1,0:T(8,128)}', space=vmem, size = 0x20000, scoped, tag = 'scratch operand']
  %s0 = inlined_call_operand.vmem [shape: s32[8,2], index: 0, kind: input, shape index: {}]
  %s1 = inlined_call_operand.hbm [shape: f32[50,1,512], index: 1, kind: input, shape index: {}]
  %s2 = inlined_call_operand.hbm [shape: f32[128,512], index: 2, kind: input, shape index: {}]
  %s3 = inlined_call_operand.hbm [shape: f32[128,128], index: 3, kind: input, shape index: {}]
  %s4 = inlined_call_operand.vmem [shape: f32[1,128], index: 4, kind: input, shape index: {}]
  %s5 = inlined_call_operand.vmem [shape: f32[8,128], index: 5, kind: output, shape index: {}]
  %s6 = sld [smem:[#allocation0]]
  $region46: #{lstm_forward.1} parent=0
    _
  %s8 = ssub.s32 1, %s6
  %s9 = scalar_select 0, %s8, %s6
  $region1: #{lstm_forward.1} parent=0
    #allocation3 [shape = 'u8[4096]{0}', space=smem, size = 0x1000, scoped, tag = 'input window, operand 0, single buffered']
    #allocation4 [shape = 's32[1]{0}', space=sflag, size = 0x4, scoped, tag = 'scoped memory for lstm_forward.1']
    #allocation5 [shape = 's32[1]{0}', space=sflag, size = 0x4, scoped, tag = 'scoped memory for lstm_forward.1']
    #allocation6 [shape = 'u8[102400]{0}', space=vmem, size = 0x19000, scoped, tag = 'input window, operand 1, single buffered']
    #allocation7 [shape = 'u8[262144]{0}', space=vmem, size = 0x40000, scoped, tag = 'input window, operand 2, single buffered']
    #allocation8 [shape = 's32[1]{0}', space=sflag, size = 0x4, scoped, tag = 'scoped memory for lstm_forward.1']
    #allocation9 [shape = 'u8[65536]{0}', space=vmem, size = 0x10000, scoped, tag = 'input window, operand 3, single buffered']
    %10 = vsyncpa [#allocation5], 0
    %11 = vsyncpa [#allocation4], 0
    %12 = vsyncpa [#allocation8], 0
    // Predicated region
    $region2: #{lstm_forward.1} parent=1 // pred_check
      _
    $region3: #{lstm_forward.1} parent=1 // pred_check_branch
      %14 = sbr.rel (0) target = $region5
    $region4: #{lstm_forward.1} parent=1 // pred_region
      %16 = vsyncadd [#allocation5], 0
      %s18 = sshll.u32 %s0, 4
      %s19 = int_to_ptr.vmem [resolvable:$true] %s18
      %21 = dma.vmem_to_smem %s19, 128, [#allocation3], [#allocation5]
    $region5: #{lstm_forward.1} parent=1 // pred_fallthru
      _
    // Predicated region
    $region6: #{lstm_forward.1} parent=1 // pred_check
      _
    $region7: #{lstm_forward.1} parent=1 // pred_check_branch
      %23 = sbr.rel (0) target = $region9
    $region8: #{lstm_forward.1} parent=1 // pred_region
      %25 = vsyncadd [#allocation4], 0
      %s26 = sshll.u32 %s1, 4
      %s27 = int_to_ptr.hbm [resolvable:$true] %s26
      %s28 = sshll.u32 [#allocation6], 4
      %s29 = int_to_ptr.vmem [resolvable:$true] %s28
      %34 = dma.hbm_to_vmem [thread:$0]  %s27, 3200, %s29, [#allocation4], 64, 64, 4
    $region9: #{lstm_forward.1} parent=1 // pred_fallthru
      _
    // Predicated region
    $region10: #{lstm_forward.1} parent=1 // pred_check
      _
    $region11: #{lstm_forward.1} parent=1 // pred_check_branch
      %36 = sbr.rel (0) target = $region13
    $region12: #{lstm_forward.1} parent=1 // pred_region
      %38 = vsyncadd [#allocation8], 0
      %s39 = sshll.u32 %s2, 4
      %s40 = int_to_ptr.hbm [resolvable:$true] %s39
      %s41 = sshll.u32 [#allocation7], 4
      %s42 = int_to_ptr.vmem [resolvable:$true] %s41
      %47 = dma.hbm_to_vmem [thread:$0]  %s40, 8192, %s42, [#allocation8], 512, 512, 32
    $region13: #{lstm_forward.1} parent=1 // pred_fallthru
      _
    // Predicated region
    $region14: #{lstm_forward.1} parent=1 // pred_check
      _
    $region15: #{lstm_forward.1} parent=1 // pred_check_branch
      %49 = sbr.rel (0) target = $region17
    $region16: #{lstm_forward.1} parent=1 // pred_region
      %51 = vsyncadd [#allocation8], 0
      %s52 = sshll.u32 %s3, 4
      %s53 = int_to_ptr.hbm [resolvable:$true] %s52
      %s54 = sshll.u32 [#allocation9], 4
      %s55 = int_to_ptr.vmem [resolvable:$true] %s54
      %60 = dma.hbm_to_vmem [thread:$0]  %s53, 2048, %s55, [#allocation8], 128, 128, 8
    $region17: #{lstm_forward.1} parent=1 // pred_fallthru
      _
    // Predicated region
    $region18: #{lstm_forward.1} parent=1 // pred_check
      _
    $region19: #{lstm_forward.1} parent=1 // pred_check_branch
      %62 = sbr.rel (0) target = $region21
    $region20: #{lstm_forward.1} parent=1 // pred_region
      _
    $region21: #{lstm_forward.1} parent=1 // pred_fallthru
      _
    // Predicated region
    $region22: #{lstm_forward.1} parent=1 // pred_check
      _
    $region23: #{lstm_forward.1} parent=1 // pred_check_branch
      %64 = sbr.rel (0) target = $region25
    $region24: #{lstm_forward.1} parent=1 // pred_region
      %66 = dma.done [#allocation5], 128
    $region25: #{lstm_forward.1} parent=1 // pred_fallthru
      _
    // Predicated region
    $region26: #{lstm_forward.1} parent=1 // pred_check
      _
    $region27: #{lstm_forward.1} parent=1 // pred_check_branch
      %68 = sbr.rel (0) target = $region29
    $region28: #{lstm_forward.1} parent=1 // pred_region
      %70 = dma.done [#allocation4], 3200
    $region29: #{lstm_forward.1} parent=1 // pred_fallthru
      _
    // Predicated region
    $region30: #{lstm_forward.1} parent=1 // pred_check
      _
    $region31: #{lstm_forward.1} parent=1 // pred_check_branch
      %72 = sbr.rel (0) target = $region33
    $region32: #{lstm_forward.1} parent=1 // pred_region
      %74 = dma.done [#allocation8], 8192
    $region33: #{lstm_forward.1} parent=1 // pred_fallthru
      _
    // Predicated region
    $region34: #{lstm_forward.1} parent=1 // pred_check
      _
    $region35: #{lstm_forward.1} parent=1 // pred_check_branch
      %76 = sbr.rel (0) target = $region37
    $region36: #{lstm_forward.1} parent=1 // pred_region
      %78 = dma.done [#allocation8], 2048
    $region37: #{lstm_forward.1} parent=1 // pred_fallthru
      _
    %79 = sfence
    %80 = vst [vmem:[#allocation2] sm:$0xff] 0.0
    %81 = vst [vmem:[#allocation2 + $0x8] sm:$0xff] 0.0
    %82 = vst [vmem:[#allocation2 + $0x10] sm:$0xff] 0.0
    %83 = vst [vmem:[#allocation2 + $0x18] sm:$0xff] 0.0
    %84 = vst [vmem:[#allocation2 + $0x20] sm:$0xff] 0.0
    %85 = vst [vmem:[#allocation2 + $0x28] sm:$0xff] 0.0
    %86 = vst [vmem:[#allocation2 + $0x30] sm:$0xff] 0.0
    %87 = vst [vmem:[#allocation2 + $0x38] sm:$0xff] 0.0
    %88 = vst [vmem:[#allocation2 + $0x40] sm:$0xff] 0.0
    %89 = vst [vmem:[#allocation2 + $0x48] sm:$0xff] 0.0
    %90 = vst [vmem:[#allocation2 + $0x50] sm:$0xff] 0.0
    %91 = vst [vmem:[#allocation2 + $0x58] sm:$0xff] 0.0
    %92 = vst [vmem:[#allocation2 + $0x60] sm:$0xff] 0.0
    %93 = vst [vmem:[#allocation2 + $0x68] sm:$0xff] 0.0
    %94 = vst [vmem:[#allocation2 + $0x70] sm:$0xff] 0.0
    %95 = vst [vmem:[#allocation2 + $0x78] sm:$0xff] 0.0
    %96 = vst [vmem:[#allocation2 + $0x80] sm:$0xff] 0.0
    %97 = vst [vmem:[#allocation2 + $0x88] sm:$0xff] 0.0
    %98 = vst [vmem:[#allocation2 + $0x90] sm:$0xff] 0.0
    %99 = vst [vmem:[#allocation2 + $0x98] sm:$0xff] 0.0
    %100 = vst [vmem:[#allocation2 + $0xa0] sm:$0xff] 0.0
    %101 = vst [vmem:[#allocation2 + $0xa8] sm:$0xff] 0.0
    %102 = vst [vmem:[#allocation2 + $0xb0] sm:$0xff] 0.0
    %103 = vst [vmem:[#allocation2 + $0xb8] sm:$0xff] 0.0
    %104 = vst [vmem:[#allocation2 + $0xc0] sm:$0xff] 0.0
    %105 = vst [vmem:[#allocation2 + $0xc8] sm:$0xff] 0.0
    %106 = vst [vmem:[#allocation2 + $0xd0] sm:$0xff] 0.0
    %107 = vst [vmem:[#allocation2 + $0xd8] sm:$0xff] 0.0
    %108 = vst [vmem:[#allocation2 + $0xe0] sm:$0xff] 0.0
    %109 = vst [vmem:[#allocation2 + $0xe8] sm:$0xff] 0.0
    %110 = vst [vmem:[#allocation2 + $0xf0] sm:$0xff] 0.0
    %111 = vst [vmem:[#allocation2 + $0xf8] sm:$0xff] 0.0
    %s112 = sld [smem:[#allocation3]]
    %s113 = smul.u32 %s112, 4
    %s114 = scalar_lea.vmem [#allocation6], %s113
    %v115 = vld [vmem:[%s114] sm:$0xf]
    %v116 = vlaneseq
    %vm117 = vcmp.ge.s32.totalorder %v116, 0
    %vm118 = vcmp.lt.s32.totalorder %v116, 512
    %vm119 = vmand %vm117, %vm118
    %120 = vst.msk [vmem:[#allocation2] ss:$8 sm:$0xf] %vm119, %v115
    %121 = vst.msk [vmem:[#allocation2] ss:$8 sm:$0x0] %vm119, %v115
    %s122 = sld [smem:[#allocation3 + $0x1]]
    %s123 = smul.u32 %s122, 4
    %s124 = scalar_lea.vmem [#allocation6], %s123
    %v125 = vld [vmem:[%s124] sm:$0xf]
    %s126 = scalar_lea.vmem [#allocation2], 1
    %127 = vst.msk [vmem:[%s126] ss:$8 sm:$0xf] %vm119, %v125
    %128 = vst.msk [vmem:[%s126] ss:$8 sm:$0x0] %vm119, %v125
    %s129 = sld [smem:[#allocation3 + $0x80]]
    %s130 = smul.u32 %s129, 4
    %s131 = scalar_lea.vmem [#allocation6], %s130
    %v132 = vld [vmem:[%s131] sm:$0xf]
    %s133 = scalar_lea.vmem [#allocation2], 32
    %134 = vst.msk [vmem:[%s133] ss:$8 sm:$0xf] %vm119, %v132
    %135 = vst.msk [vmem:[%s133] ss:$8 sm:$0x0] %vm119, %v132
    %s136 = sld [smem:[#allocation3 + $0x81]]
    %s137 = smul.u32 %s136, 4
    %s138 = scalar_lea.vmem [#allocation6], %s137
    %v139 = vld [vmem:[%s138] sm:$0xf]
    %s140 = scalar_lea.vmem [#allocation2], 33
    %141 = vst.msk [vmem:[%s140] ss:$8 sm:$0xf] %vm119, %v139
    %142 = vst.msk [vmem:[%s140] ss:$8 sm:$0x0] %vm119, %v139
    %s143 = sld [smem:[#allocation3 + $0x100]]
    %s144 = smul.u32 %s143, 4
    %s145 = scalar_lea.vmem [#allocation6], %s144
    %v146 = vld [vmem:[%s145] sm:$0xf]
    %s147 = scalar_lea.vmem [#allocation2], 64
    %148 = vst.msk [vmem:[%s147] ss:$8 sm:$0xf] %vm119, %v146
    %149 = vst.msk [vmem:[%s147] ss:$8 sm:$0x0] %vm119, %v146
    %s150 = sld [smem:[#allocation3 + $0x101]]
    %s151 = smul.u32 %s150, 4
    %s152 = scalar_lea.vmem [#allocation6], %s151
    %v153 = vld [vmem:[%s152] sm:$0xf]
    %s154 = scalar_lea.vmem [#allocation2], 65
    %155 = vst.msk [vmem:[%s154] ss:$8 sm:$0xf] %vm119, %v153
    %156 = vst.msk [vmem:[%s154] ss:$8 sm:$0x0] %vm119, %v153
    %s157 = sld [smem:[#allocation3 + $0x180]]
    %s158 = smul.u32 %s157, 4
    %s159 = scalar_lea.vmem [#allocation6], %s158
    %v160 = vld [vmem:[%s159] sm:$0xf]
    %s161 = scalar_lea.vmem [#allocation2], 96
    %162 = vst.msk [vmem:[%s161] ss:$8 sm:$0xf] %vm119, %v160
    %163 = vst.msk [vmem:[%s161] ss:$8 sm:$0x0] %vm119, %v160
    %s164 = sld [smem:[#allocation3 + $0x181]]
    %s165 = smul.u32 %s164, 4
    %s166 = scalar_lea.vmem [#allocation6], %s165
    %v167 = vld [vmem:[%s166] sm:$0xf]
    %s168 = scalar_lea.vmem [#allocation2], 97
    %169 = vst.msk [vmem:[%s168] ss:$8 sm:$0xf] %vm119, %v167
    %170 = vst.msk [vmem:[%s168] ss:$8 sm:$0x0] %vm119, %v167
    %s171 = sld [smem:[#allocation3 + $0x200]]
    %s172 = smul.u32 %s171, 4
    %s173 = scalar_lea.vmem [#allocation6], %s172
    %v174 = vld [vmem:[%s173] sm:$0xf]
    %s175 = scalar_lea.vmem [#allocation2], 128
    %176 = vst.msk [vmem:[%s175] ss:$8 sm:$0xf] %vm119, %v174
    %177 = vst.msk [vmem:[%s175] ss:$8 sm:$0x0] %vm119, %v174
    %s178 = sld [smem:[#allocation3 + $0x201]]
    %s179 = smul.u32 %s178, 4
    %s180 = scalar_lea.vmem [#allocation6], %s179
    %v181 = vld [vmem:[%s180] sm:$0xf]
    %s182 = scalar_lea.vmem [#allocation2], 129
    %183 = vst.msk [vmem:[%s182] ss:$8 sm:$0xf] %vm119, %v181
    %184 = vst.msk [vmem:[%s182] ss:$8 sm:$0x0] %vm119, %v181
    %s185 = sld [smem:[#allocation3 + $0x280]]
    %s186 = smul.u32 %s185, 4
    %s187 = scalar_lea.vmem [#allocation6], %s186
    %v188 = vld [vmem:[%s187] sm:$0xf]
    %s189 = scalar_lea.vmem [#allocation2], 160
    %190 = vst.msk [vmem:[%s189] ss:$8 sm:$0xf] %vm119, %v188
    %191 = vst.msk [vmem:[%s189] ss:$8 sm:$0x0] %vm119, %v188
    %s192 = sld [smem:[#allocation3 + $0x281]]
    %s193 = smul.u32 %s192, 4
    %s194 = scalar_lea.vmem [#allocation6], %s193
    %v195 = vld [vmem:[%s194] sm:$0xf]
    %s196 = scalar_lea.vmem [#allocation2], 161
    %197 = vst.msk [vmem:[%s196] ss:$8 sm:$0xf] %vm119, %v195
    %198 = vst.msk [vmem:[%s196] ss:$8 sm:$0x0] %vm119, %v195
    %s199 = sld [smem:[#allocation3 + $0x300]]
    %s200 = smul.u32 %s199, 4
    %s201 = scalar_lea.vmem [#allocation6], %s200
    %v202 = vld [vmem:[%s201] sm:$0xf]
    %s203 = scalar_lea.vmem [#allocation2], 192
    %204 = vst.msk [vmem:[%s203] ss:$8 sm:$0xf] %vm119, %v202
    %205 = vst.msk [vmem:[%s203] ss:$8 sm:$0x0] %vm119, %v202
    %s206 = sld [smem:[#allocation3 + $0x301]]
    %s207 = smul.u32 %s206, 4
    %s208 = scalar_lea.vmem [#allocation6], %s207
    %v209 = vld [vmem:[%s208] sm:$0xf]
    %s210 = scalar_lea.vmem [#allocation2], 193
    %211 = vst.msk [vmem:[%s210] ss:$8 sm:$0xf] %vm119, %v209
    %212 = vst.msk [vmem:[%s210] ss:$8 sm:$0x0] %vm119, %v209
    %s213 = sld [smem:[#allocation3 + $0x380]]
    %s214 = smul.u32 %s213, 4
    %s215 = scalar_lea.vmem [#allocation6], %s214
    %v216 = vld [vmem:[%s215] sm:$0xf]
    %s217 = scalar_lea.vmem [#allocation2], 224
    %218 = vst.msk [vmem:[%s217] ss:$8 sm:$0xf] %vm119, %v216
    %219 = vst.msk [vmem:[%s217] ss:$8 sm:$0x0] %vm119, %v216
    %s220 = sld [smem:[#allocation3 + $0x381]]
    %s221 = smul.u32 %s220, 4
    %s222 = scalar_lea.vmem [#allocation6], %s221
    %v223 = vld [vmem:[%s222] sm:$0xf]
    %s224 = scalar_lea.vmem [#allocation2], 225
    %225 = vst.msk [vmem:[%s224] ss:$8 sm:$0xf] %vm119, %v223
    %226 = vst.msk [vmem:[%s224] ss:$8 sm:$0x0] %vm119, %v223
    %v227 = vld [vmem:[#allocation7] sm:$0xff]
    %v228 = vld [vmem:[#allocation7 + $0x8] sm:$0xff]
    %v229 = vld [vmem:[#allocation7 + $0x10] sm:$0xff]
    %v230 = vld [vmem:[#allocation7 + $0x18] sm:$0xff]
    %v231 = vld [vmem:[#allocation7 + $0x20] sm:$0xff]
    %v232 = vld [vmem:[#allocation7 + $0x28] sm:$0xff]
    %v233 = vld [vmem:[#allocation7 + $0x30] sm:$0xff]
    %v234 = vld [vmem:[#allocation7 + $0x38] sm:$0xff]
    %v235 = vld [vmem:[#allocation7 + $0x40] sm:$0xff]
    %v236 = vld [vmem:[#allocation7 + $0x48] sm:$0xff]
    %v237 = vld [vmem:[#allocation7 + $0x50] sm:$0xff]
    %v238 = vld [vmem:[#allocation7 + $0x58] sm:$0xff]
    %v239 = vld [vmem:[#allocation7 + $0x60] sm:$0xff]
    %v240 = vld [vmem:[#allocation7 + $0x68] sm:$0xff]
    %v241 = vld [vmem:[#allocation7 + $0x70] sm:$0xff]
    %v242 = vld [vmem:[#allocation7 + $0x78] sm:$0xff]
    %v243 = vld [vmem:[#allocation7 + $0x80] sm:$0xff]
    %v244 = vld [vmem:[#allocation7 + $0x88] sm:$0xff]
    %v245 = vld [vmem:[#allocation7 + $0x90] sm:$0xff]
    %v246 = vld [vmem:[#allocation7 + $0x98] sm:$0xff]
    %v247 = vld [vmem:[#allocation7 + $0xa0] sm:$0xff]
    %v248 = vld [vmem:[#allocation7 + $0xa8] sm:$0xff]
    %v249 = vld [vmem:[#allocation7 + $0xb0] sm:$0xff]
    %v250 = vld [vmem:[#allocation7 + $0xb8] sm:$0xff]
    %v251 = vld [vmem:[#allocation7 + $0xc0] sm:$0xff]
    %v252 = vld [vmem:[#allocation7 + $0xc8] sm:$0xff]
    %v253 = vld [vmem:[#allocation7 + $0xd0] sm:$0xff]
    %v254 = vld [vmem:[#allocation7 + $0xd8] sm:$0xff]
    %v255 = vld [vmem:[#allocation7 + $0xe0] sm:$0xff]
    %v256 = vld [vmem:[#allocation7 + $0xe8] sm:$0xff]
    %v257 = vld [vmem:[#allocation7 + $0xf0] sm:$0xff]
    %v258 = vld [vmem:[#allocation7 + $0xf8] sm:$0xff]
    %v259 = vld [vmem:[#allocation7 + $0x100] sm:$0xff]
    %v260 = vld [vmem:[#allocation7 + $0x108] sm:$0xff]
    %v261 = vld [vmem:[#allocation7 + $0x110] sm:$0xff]
    %v262 = vld [vmem:[#allocation7 + $0x118] sm:$0xff]
    %v263 = vld [vmem:[#allocation7 + $0x120] sm:$0xff]
    %v264 = vld [vmem:[#allocation7 + $0x128] sm:$0xff]
    %v265 = vld [vmem:[#allocation7 + $0x130] sm:$0xff]
    %v266 = vld [vmem:[#allocation7 + $0x138] sm:$0xff]
    %v267 = vld [vmem:[#allocation7 + $0x140] sm:$0xff]
    %v268 = vld [vmem:[#allocation7 + $0x148] sm:$0xff]
    %v269 = vld [vmem:[#allocation7 + $0x150] sm:$0xff]
    %v270 = vld [vmem:[#allocation7 + $0x158] sm:$0xff]
    %v271 = vld [vmem:[#allocation7 + $0x160] sm:$0xff]
    %v272 = vld [vmem:[#allocation7 + $0x168] sm:$0xff]
    %v273 = vld [vmem:[#allocation7 + $0x170] sm:$0xff]
    %v274 = vld [vmem:[#allocation7 + $0x178] sm:$0xff]
    %v275 = vld [vmem:[#allocation7 + $0x180] sm:$0xff]
    %v276 = vld [vmem:[#allocation7 + $0x188] sm:$0xff]
    %v277 = vld [vmem:[#allocation7 + $0x190] sm:$0xff]
    %v278 = vld [vmem:[#allocation7 + $0x198] sm:$0xff]
    %v279 = vld [vmem:[#allocation7 + $0x1a0] sm:$0xff]
    %v280 = vld [vmem:[#allocation7 + $0x1a8] sm:$0xff]
    %v281 = vld [vmem:[#allocation7 + $0x1b0] sm:$0xff]
    %v282 = vld [vmem:[#allocation7 + $0x1b8] sm:$0xff]
    %v283 = vld [vmem:[#allocation7 + $0x1c0] sm:$0xff]
    %v284 = vld [vmem:[#allocation7 + $0x1c8] sm:$0xff]
    %v285 = vld [vmem:[#allocation7 + $0x1d0] sm:$0xff]
    %v286 = vld [vmem:[#allocation7 + $0x1d8] sm:$0xff]
    %v287 = vld [vmem:[#allocation7 + $0x1e0] sm:$0xff]
    %v288 = vld [vmem:[#allocation7 + $0x1e8] sm:$0xff]
    %v289 = vld [vmem:[#allocation7 + $0x1f0] sm:$0xff]
    %v290 = vld [vmem:[#allocation7 + $0x1f8] sm:$0xff]
    %v291 = vld [vmem:[#allocation2] sm:$0xff]
    %v292 = vld [vmem:[#allocation2 + $0x10] sm:$0xff]
    %v293 = vld [vmem:[#allocation2 + $0x18] sm:$0xff]
    %v294 = vxor.u32 %v291, 2147483648
    %v295 = vxor.u32 %v292, 2147483648
    %v296 = vmul.f32 %v294, 1.442695
    %v297 = vpow.pop %v296
    %v298 = vmul.f32 %v295, 1.442695
    %v299 = vpow.pop %v298
    %v300 = vadd.f32 %v297, 1.0
    %v301 = vadd.f32 %v299, 1.0
    %v302 = vrcp.pop %v300
    %v303 = vmul.f32 %v300, %v302
    %v304 = vsub.f32 1.0, %v303
    %v305 = vmul.f32 %v302, %v304
    %v306 = vadd.f32 %v302, %v305
    %vm307 = vweird.f32 %v300
    %vm308 = vweird.f32 %v302
    %vm309 = vmor %vm307, %vm308
    %v310 = vsel %vm309, %v302, %v306
    %v311 = vand.u32 2147483647, %v300
    %vm312 = vcmp.eq.f32.partialorder %v311, 8.507059e+37
    %v313 = vand.u32 %v300, 2147483648
    %v314 = vor.u32 1.1754944e-38, %v313
    %v315 = vsel %vm312, %v314, %v310
    %v316 = vmul.f32 1.0, %v315
    %v317 = vrcp.pop %v301
    %v318 = vmul.f32 %v301, %v317
    %v319 = vsub.f32 1.0, %v318
    %v320 = vmul.f32 %v317, %v319
    %v321 = vadd.f32 %v317, %v320
    %vm322 = vweird.f32 %v301
    %vm323 = vweird.f32 %v317
    %vm324 = vmor %vm322, %vm323
    %v325 = vsel %vm324, %v317, %v321
    %v326 = vand.u32 2147483647, %v301
    %vm327 = vcmp.eq.f32.partialorder %v326, 8.507059e+37
    %v328 = vand.u32 %v301, 2147483648
    %v329 = vor.u32 1.1754944e-38, %v328
    %v330 = vsel %vm327, %v329, %v325
    %v331 = vmul.f32 1.0, %v330
    %v332 = vtanh.pop %v293
    %v333 = vmul.f32 %v316, %v332
    %v334 = vtanh.pop %v333
    %v335 = vmul.f32 %v331, %v334
    %v336 = vld [vmem:[#allocation2 + $0x20] sm:$0xff]
    %v337 = vld [vmem:[#allocation2 + $0x28] sm:$0xff]
    %v338 = vld [vmem:[#allocation2 + $0x30] sm:$0xff]
    %v339 = vld [vmem:[#allocation2 + $0x38] sm:$0xff]
    %340 = vmatpush.msra.mxu0 %v287
    %341 = vmatpush.msra.mxu0 %v283
    %342 = vmatpush.msra.mxu0 %v279
    %343 = vmatpush.msra.mxu0 %v275
    %344 = vmatpush.msra.mxu0 %v271
    %345 = vmatpush.msra.mxu0 %v267
    %346 = vmatpush.msra.mxu0 %v263
    %347 = vmatpush.msra.mxu0 %v259
    %348 = vmatpush.msra.mxu0 %v255
    %349 = vmatpush.msra.mxu0 %v251
    %350 = vmatpush.msra.mxu0 %v247
    %351 = vmatpush.msra.mxu0 %v243
    %352 = vmatpush.msra.mxu0 %v239
    %353 = vmatpush.msra.mxu0 %v235
    %354 = vmatpush.msra.mxu0 %v231
    %355 = vmatpush.msra.mxu0 %v227
    %356 = vmatmul.f32.gmra.mxu0 %v335
    %v357 = vpop.f32.mrf.mxu0
    %v358 = vadd.f32 0.0, %v357
    %359 = vdwg.mxu0
    %360 = vmatpush.msra.mxu0 %v288
    %361 = vmatpush.msra.mxu0 %v284
    %362 = vmatpush.msra.mxu0 %v280
    %363 = vmatpush.msra.mxu0 %v276
    %364 = vmatpush.msra.mxu0 %v272
    %365 = vmatpush.msra.mxu0 %v268
    %366 = vmatpush.msra.mxu0 %v264
    %367 = vmatpush.msra.mxu0 %v260
    %368 = vmatpush.msra.mxu0 %v256
    %369 = vmatpush.msra.mxu0 %v252
    %370 = vmatpush.msra.mxu0 %v248
    %371 = vmatpush.msra.mxu0 %v244
    %372 = vmatpush.msra.mxu0 %v240
    %373 = vmatpush.msra.mxu0 %v236
    %374 = vmatpush.msra.mxu0 %v232
    %375 = vmatpush.msra.mxu0 %v228
    %376 = vmatmul.f32.gmra.mxu0 %v335
    %v377 = vpop.f32.mrf.mxu0
    %v378 = vadd.f32 0.0, %v377
    %379 = vdwg.mxu0
    %380 = vmatpush.msra.mxu0 %v289
    %381 = vmatpush.msra.mxu0 %v285
    %382 = vmatpush.msra.mxu0 %v281
    %383 = vmatpush.msra.mxu0 %v277
    %384 = vmatpush.msra.mxu0 %v273
    %385 = vmatpush.msra.mxu0 %v269
    %386 = vmatpush.msra.mxu0 %v265
    %387 = vmatpush.msra.mxu0 %v261
    %388 = vmatpush.msra.mxu0 %v257
    %389 = vmatpush.msra.mxu0 %v253
    %390 = vmatpush.msra.mxu0 %v249
    %391 = vmatpush.msra.mxu0 %v245
    %392 = vmatpush.msra.mxu0 %v241
    %393 = vmatpush.msra.mxu0 %v237
    %394 = vmatpush.msra.mxu0 %v233
    %395 = vmatpush.msra.mxu0 %v229
    %396 = vmatmul.f32.gmra.mxu0 %v335
    %v397 = vpop.f32.mrf.mxu0
    %v398 = vadd.f32 0.0, %v397
    %399 = vdwg.mxu0
    %400 = vmatpush.msra.mxu0 %v290
    %401 = vmatpush.msra.mxu0 %v286
    %402 = vmatpush.msra.mxu0 %v282
    %403 = vmatpush.msra.mxu0 %v278
    %404 = vmatpush.msra.mxu0 %v274
    %405 = vmatpush.msra.mxu0 %v270
    %406 = vmatpush.msra.mxu0 %v266
    %407 = vmatpush.msra.mxu0 %v262
    %408 = vmatpush.msra.mxu0 %v258
    %409 = vmatpush.msra.mxu0 %v254
    %410 = vmatpush.msra.mxu0 %v250
    %411 = vmatpush.msra.mxu0 %v246
    %412 = vmatpush.msra.mxu0 %v242
    %413 = vmatpush.msra.mxu0 %v238
    %414 = vmatpush.msra.mxu0 %v234
    %415 = vmatpush.msra.mxu0 %v230
    %416 = vmatmul.f32.gmra.mxu0 %v335
    %v417 = vpop.f32.mrf.mxu0
    %v418 = vadd.f32 0.0, %v417
    %419 = vdwg.mxu0
    %v420 = vadd.f32 %v336, %v358
    %v421 = vadd.f32 %v337, %v378
    %v422 = vadd.f32 %v338, %v398
    %v423 = vadd.f32 %v339, %v418
    %v424 = vxor.u32 %v420, 2147483648
    %v425 = vxor.u32 %v421, 2147483648
    %v426 = vxor.u32 %v422, 2147483648
    %v427 = vmul.f32 %v424, 1.442695
    %v428 = vpow.pop %v427
    %v429 = vmul.f32 %v425, 1.442695
    %v430 = vpow.pop %v429
    %v431 = vmul.f32 %v426, 1.442695
    %v432 = vpow.pop %v431
    %v433 = vadd.f32 %v428, 1.0
    %v434 = vadd.f32 %v430, 1.0
    %v435 = vadd.f32 %v432, 1.0
    %v436 = vrcp.pop %v433
    %v437 = vmul.f32 %v433, %v436
    %v438 = vsub.f32 1.0, %v437
    %v439 = vmul.f32 %v436, %v438
    %v440 = vadd.f32 %v436, %v439
    %vm441 = vweird.f32 %v433
    %vm442 = vweird.f32 %v436
    %vm443 = vmor %vm441, %vm442
    %v444 = vsel %vm443, %v436, %v440
    %v445 = vand.u32 2147483647, %v433
    %vm446 = vcmp.eq.f32.partialorder %v445, 8.507059e+37
    %v447 = vand.u32 %v433, 2147483648
    %v448 = vor.u32 1.1754944e-38, %v447
    %v449 = vsel %vm446, %v448, %v444
    %v450 = vmul.f32 1.0, %v449
    %v451 = vrcp.pop %v434
    %v452 = vmul.f32 %v434, %v451
    %v453 = vsub.f32 1.0, %v452
    %v454 = vmul.f32 %v451, %v453
    %v455 = vadd.f32 %v451, %v454
    %vm456 = vweird.f32 %v434
    %vm457 = vweird.f32 %v451
    %vm458 = vmor %vm456, %vm457
    %v459 = vsel %vm458, %v451, %v455
    %v460 = vand.u32 2147483647, %v434
    %vm461 = vcmp.eq.f32.partialorder %v460, 8.507059e+37
    %v462 = vand.u32 %v434, 2147483648
    %v463 = vor.u32 1.1754944e-38, %v462
    %v464 = vsel %vm461, %v463, %v459
    %v465 = vmul.f32 1.0, %v464
    %v466 = vrcp.pop %v435
    %v467 = vmul.f32 %v435, %v466
    %v468 = vsub.f32 1.0, %v467
    %v469 = vmul.f32 %v466, %v468
    %v470 = vadd.f32 %v466, %v469
    %vm471 = vweird.f32 %v435
    %vm472 = vweird.f32 %v466
    %vm473 = vmor %vm471, %vm472
    %v474 = vsel %vm473, %v466, %v470
    %v475 = vand.u32 2147483647, %v435
    %vm476 = vcmp.eq.f32.partialorder %v475, 8.507059e+37
    %v477 = vand.u32 %v435, 2147483648
    %v478 = vor.u32 1.1754944e-38, %v477
    %v479 = vsel %vm476, %v478, %v474
    %v480 = vmul.f32 1.0, %v479
    %v481 = vtanh.pop %v423
    %v482 = vmul.f32 %v450, %v481
    %v483 = vmul.f32 %v465, %v333
    %v484 = vadd.f32 %v483, %v482
    %v485 = vtanh.pop %v484
    %v486 = vmul.f32 %v480, %v485
    %v487 = vmax.f32 %v335, %v486
    %v488 = vld [vmem:[#allocation2 + $0x40] sm:$0xff]
    %v489 = vld [vmem:[#allocation2 + $0x48] sm:$0xff]
    %v490 = vld [vmem:[#allocation2 + $0x50] sm:$0xff]
    %v491 = vld [vmem:[#allocation2 + $0x58] sm:$0xff]
    %492 = vmatpush.msra.mxu0 %v287
    %493 = vmatpush.msra.mxu0 %v283
    %494 = vmatpush.msra.mxu0 %v279
    %495 = vmatpush.msra.mxu0 %v275
    %496 = vmatpush.msra.mxu0 %v271
    %497 = vmatpush.msra.mxu0 %v267
    %498 = vmatpush.msra.mxu0 %v263
    %499 = vmatpush.msra.mxu0 %v259
    %500 = vmatpush.msra.mxu0 %v255
    %501 = vmatpush.msra.mxu0 %v251
    %502 = vmatpush.msra.mxu0 %v247
    %503 = vmatpush.msra.mxu0 %v243
    %504 = vmatpush.msra.mxu0 %v239
    %505 = vmatpush.msra.mxu0 %v235
    %506 = vmatpush.msra.mxu0 %v231
    %507 = vmatpush.msra.mxu0 %v227
    %508 = vmatmul.f32.gmra.mxu0 %v486
    %v509 = vpop.f32.mrf.mxu0
    %v510 = vadd.f32 0.0, %v509
    %511 = vdwg.mxu0
    %512 = vmatpush.msra.mxu0 %v288
    %513 = vmatpush.msra.mxu0 %v284
    %514 = vmatpush.msra.mxu0 %v280
    %515 = vmatpush.msra.mxu0 %v276
    %516 = vmatpush.msra.mxu0 %v272
    %517 = vmatpush.msra.mxu0 %v268
    %518 = vmatpush.msra.mxu0 %v264
    %519 = vmatpush.msra.mxu0 %v260
    %520 = vmatpush.msra.mxu0 %v256
    %521 = vmatpush.msra.mxu0 %v252
    %522 = vmatpush.msra.mxu0 %v248
    %523 = vmatpush.msra.mxu0 %v244
    %524 = vmatpush.msra.mxu0 %v240
    %525 = vmatpush.msra.mxu0 %v236
    %526 = vmatpush.msra.mxu0 %v232
    %527 = vmatpush.msra.mxu0 %v228
    %528 = vmatmul.f32.gmra.mxu0 %v486
    %v529 = vpop.f32.mrf.mxu0
    %v530 = vadd.f32 0.0, %v529
    %531 = vdwg.mxu0
    %532 = vmatpush.msra.mxu0 %v289
    %533 = vmatpush.msra.mxu0 %v285
    %534 = vmatpush.msra.mxu0 %v281
    %535 = vmatpush.msra.mxu0 %v277
    %536 = vmatpush.msra.mxu0 %v273
    %537 = vmatpush.msra.mxu0 %v269
    %538 = vmatpush.msra.mxu0 %v265
    %539 = vmatpush.msra.mxu0 %v261
    %540 = vmatpush.msra.mxu0 %v257
    %541 = vmatpush.msra.mxu0 %v253
    %542 = vmatpush.msra.mxu0 %v249
    %543 = vmatpush.msra.mxu0 %v245
    %544 = vmatpush.msra.mxu0 %v241
    %545 = vmatpush.msra.mxu0 %v237
    %546 = vmatpush.msra.mxu0 %v233
    %547 = vmatpush.msra.mxu0 %v229
    %548 = vmatmul.f32.gmra.mxu0 %v486
    %v549 = vpop.f32.mrf.mxu0
    %v550 = vadd.f32 0.0, %v549
    %551 = vdwg.mxu0
    %552 = vmatpush.msra.mxu0 %v290
    %553 = vmatpush.msra.mxu0 %v286
    %554 = vmatpush.msra.mxu0 %v282
    %555 = vmatpush.msra.mxu0 %v278
    %556 = vmatpush.msra.mxu0 %v274
    %557 = vmatpush.msra.mxu0 %v270
    %558 = vmatpush.msra.mxu0 %v266
    %559 = vmatpush.msra.mxu0 %v262
    %560 = vmatpush.msra.mxu0 %v258
    %561 = vmatpush.msra.mxu0 %v254
    %562 = vmatpush.msra.mxu0 %v250
    %563 = vmatpush.msra.mxu0 %v246
    %564 = vmatpush.msra.mxu0 %v242
    %565 = vmatpush.msra.mxu0 %v238
    %566 = vmatpush.msra.mxu0 %v234
    %567 = vmatpush.msra.mxu0 %v230
    %568 = vmatmul.f32.gmra.mxu0 %v486
    %v569 = vpop.f32.mrf.mxu0
    %v570 = vadd.f32 0.0, %v569
    %571 = vdwg.mxu0
    %v572 = vadd.f32 %v488, %v510
    %v573 = vadd.f32 %v489, %v530
    %v574 = vadd.f32 %v490, %v550
    %v575 = vadd.f32 %v491, %v570
    %v576 = vxor.u32 %v572, 2147483648
    %v577 = vxor.u32 %v573, 2147483648
    %v578 = vxor.u32 %v574, 2147483648
    %v579 = vmul.f32 %v576, 1.442695
    %v580 = vpow.pop %v579
    %v581 = vmul.f32 %v577, 1.442695
    %v582 = vpow.pop %v581
    %v583 = vmul.f32 %v578, 1.442695
    %v584 = vpow.pop %v583
    %v585 = vadd.f32 %v580, 1.0
    %v586 = vadd.f32 %v582, 1.0
    %v587 = vadd.f32 %v584, 1.0
    %v588 = vrcp.pop %v585
    %v589 = vmul.f32 %v585, %v588
    %v590 = vsub.f32 1.0, %v589
    %v591 = vmul.f32 %v588, %v590
    %v592 = vadd.f32 %v588, %v591
    %vm593 = vweird.f32 %v585
    %vm594 = vweird.f32 %v588
    %vm595 = vmor %vm593, %vm594
    %v596 = vsel %vm595, %v588, %v592
    %v597 = vand.u32 2147483647, %v585
    %vm598 = vcmp.eq.f32.partialorder %v597, 8.507059e+37
    %v599 = vand.u32 %v585, 2147483648
    %v600 = vor.u32 1.1754944e-38, %v599
    %v601 = vsel %vm598, %v600, %v596
    %v602 = vmul.f32 1.0, %v601
    %v603 = vrcp.pop %v586
    %v604 = vmul.f32 %v586, %v603
    %v605 = vsub.f32 1.0, %v604
    %v606 = vmul.f32 %v603, %v605
    %v607 = vadd.f32 %v603, %v606
    %vm608 = vweird.f32 %v586
    %vm609 = vweird.f32 %v603
    %vm610 = vmor %vm608, %vm609
    %v611 = vsel %vm610, %v603, %v607
    %v612 = vand.u32 2147483647, %v586
    %vm613 = vcmp.eq.f32.partialorder %v612, 8.507059e+37
    %v614 = vand.u32 %v586, 2147483648
    %v615 = vor.u32 1.1754944e-38, %v614
    %v616 = vsel %vm613, %v615, %v611
    %v617 = vmul.f32 1.0, %v616
    %v618 = vrcp.pop %v587
    %v619 = vmul.f32 %v587, %v618
    %v620 = vsub.f32 1.0, %v619
    %v621 = vmul.f32 %v618, %v620
    %v622 = vadd.f32 %v618, %v621
    %vm623 = vweird.f32 %v587
    %vm624 = vweird.f32 %v618
    %vm625 = vmor %vm623, %vm624
    %v626 = vsel %vm625, %v618, %v622
    %v627 = vand.u32 2147483647, %v587
    %vm628 = vcmp.eq.f32.partialorder %v627, 8.507059e+37
    %v629 = vand.u32 %v587, 2147483648
    %v630 = vor.u32 1.1754944e-38, %v629
    %v631 = vsel %vm628, %v630, %v626
    %v632 = vmul.f32 1.0, %v631
    %v633 = vtanh.pop %v575
    %v634 = vmul.f32 %v602, %v633
    %v635 = vmul.f32 %v617, %v484
    %v636 = vadd.f32 %v635, %v634
    %v637 = vtanh.pop %v636
    %v638 = vmul.f32 %v632, %v637
    %v639 = vmax.f32 %v487, %v638
    %v640 = vld [vmem:[#allocation2 + $0x60] sm:$0xff]
    %v641 = vld [vmem:[#allocation2 + $0x68] sm:$0xff]
    %v642 = vld [vmem:[#allocation2 + $0x70] sm:$0xff]
    %v643 = vld [vmem:[#allocation2 + $0x78] sm:$0xff]
    %644 = vmatpush.msra.mxu0 %v287
    %645 = vmatpush.msra.mxu0 %v283
    %646 = vmatpush.msra.mxu0 %v279
    %647 = vmatpush.msra.mxu0 %v275
    %648 = vmatpush.msra.mxu0 %v271
    %649 = vmatpush.msra.mxu0 %v267
    %650 = vmatpush.msra.mxu0 %v263
    %651 = vmatpush.msra.mxu0 %v259
    %652 = vmatpush.msra.mxu0 %v255
    %653 = vmatpush.msra.mxu0 %v251
    %654 = vmatpush.msra.mxu0 %v247
    %655 = vmatpush.msra.mxu0 %v243
    %656 = vmatpush.msra.mxu0 %v239
    %657 = vmatpush.msra.mxu0 %v235
    %658 = vmatpush.msra.mxu0 %v231
    %659 = vmatpush.msra.mxu0 %v227
    %660 = vmatmul.f32.gmra.mxu0 %v638
    %v661 = vpop.f32.mrf.mxu0
    %v662 = vadd.f32 0.0, %v661
    %663 = vdwg.mxu0
    %664 = vmatpush.msra.mxu0 %v288
    %665 = vmatpush.msra.mxu0 %v284
    %666 = vmatpush.msra.mxu0 %v280
    %667 = vmatpush.msra.mxu0 %v276
    %668 = vmatpush.msra.mxu0 %v272
    %669 = vmatpush.msra.mxu0 %v268
    %670 = vmatpush.msra.mxu0 %v264
    %671 = vmatpush.msra.mxu0 %v260
    %672 = vmatpush.msra.mxu0 %v256
    %673 = vmatpush.msra.mxu0 %v252
    %674 = vmatpush.msra.mxu0 %v248
    %675 = vmatpush.msra.mxu0 %v244
    %676 = vmatpush.msra.mxu0 %v240
    %677 = vmatpush.msra.mxu0 %v236
    %678 = vmatpush.msra.mxu0 %v232
    %679 = vmatpush.msra.mxu0 %v228
    %680 = vmatmul.f32.gmra.mxu0 %v638
    %v681 = vpop.f32.mrf.mxu0
    %v682 = vadd.f32 0.0, %v681
    %683 = vdwg.mxu0
    %684 = vmatpush.msra.mxu0 %v289
    %685 = vmatpush.msra.mxu0 %v285
    %686 = vmatpush.msra.mxu0 %v281
    %687 = vmatpush.msra.mxu0 %v277
    %688 = vmatpush.msra.mxu0 %v273
    %689 = vmatpush.msra.mxu0 %v269
    %690 = vmatpush.msra.mxu0 %v265
    %691 = vmatpush.msra.mxu0 %v261
    %692 = vmatpush.msra.mxu0 %v257
    %693 = vmatpush.msra.mxu0 %v253
    %694 = vmatpush.msra.mxu0 %v249
    %695 = vmatpush.msra.mxu0 %v245
    %696 = vmatpush.msra.mxu0 %v241
    %697 = vmatpush.msra.mxu0 %v237
    %698 = vmatpush.msra.mxu0 %v233
    %699 = vmatpush.msra.mxu0 %v229
    %700 = vmatmul.f32.gmra.mxu0 %v638
    %v701 = vpop.f32.mrf.mxu0
    %v702 = vadd.f32 0.0, %v701
    %703 = vdwg.mxu0
    %704 = vmatpush.msra.mxu0 %v290
    %705 = vmatpush.msra.mxu0 %v286
    %706 = vmatpush.msra.mxu0 %v282
    %707 = vmatpush.msra.mxu0 %v278
    %708 = vmatpush.msra.mxu0 %v274
    %709 = vmatpush.msra.mxu0 %v270
    %710 = vmatpush.msra.mxu0 %v266
    %711 = vmatpush.msra.mxu0 %v262
    %712 = vmatpush.msra.mxu0 %v258
    %713 = vmatpush.msra.mxu0 %v254
    %714 = vmatpush.msra.mxu0 %v250
    %715 = vmatpush.msra.mxu0 %v246
    %716 = vmatpush.msra.mxu0 %v242
    %717 = vmatpush.msra.mxu0 %v238
    %718 = vmatpush.msra.mxu0 %v234
    %719 = vmatpush.msra.mxu0 %v230
    %720 = vmatmul.f32.gmra.mxu0 %v638
    %v721 = vpop.f32.mrf.mxu0
    %v722 = vadd.f32 0.0, %v721
    %723 = vdwg.mxu0
    %v724 = vadd.f32 %v640, %v662
    %v725 = vadd.f32 %v641, %v682
    %v726 = vadd.f32 %v642, %v702
    %v727 = vadd.f32 %v643, %v722
    %v728 = vxor.u32 %v724, 2147483648
    %v729 = vxor.u32 %v725, 2147483648
    %v730 = vxor.u32 %v726, 2147483648
    %v731 = vmul.f32 %v728, 1.442695
    %v732 = vpow.pop %v731
    %v733 = vmul.f32 %v729, 1.442695
    %v734 = vpow.pop %v733
    %v735 = vmul.f32 %v730, 1.442695
    %v736 = vpow.pop %v735
    %v737 = vadd.f32 %v732, 1.0
    %v738 = vadd.f32 %v734, 1.0
    %v739 = vadd.f32 %v736, 1.0
    %v740 = vrcp.pop %v737
    %v741 = vmul.f32 %v737, %v740
    %v742 = vsub.f32 1.0, %v741
    %v743 = vmul.f32 %v740, %v742
    %v744 = vadd.f32 %v740, %v743
    %vm745 = vweird.f32 %v737
    %vm746 = vweird.f32 %v740
    %vm747 = vmor %vm745, %vm746
    %v748 = vsel %vm747, %v740, %v744
    %v749 = vand.u32 2147483647, %v737
    %vm750 = vcmp.eq.f32.partialorder %v749, 8.507059e+37
    %v751 = vand.u32 %v737, 2147483648
    %v752 = vor.u32 1.1754944e-38, %v751
    %v753 = vsel %vm750, %v752, %v748
    %v754 = vmul.f32 1.0, %v753
    %v755 = vrcp.pop %v738
    %v756 = vmul.f32 %v738, %v755
    %v757 = vsub.f32 1.0, %v756
    %v758 = vmul.f32 %v755, %v757
    %v759 = vadd.f32 %v755, %v758
    %vm760 = vweird.f32 %v738
    %vm761 = vweird.f32 %v755
    %vm762 = vmor %vm760, %vm761
    %v763 = vsel %vm762, %v755, %v759
    %v764 = vand.u32 2147483647, %v738
    %vm765 = vcmp.eq.f32.partialorder %v764, 8.507059e+37
    %v766 = vand.u32 %v738, 2147483648
    %v767 = vor.u32 1.1754944e-38, %v766
    %v768 = vsel %vm765, %v767, %v763
    %v769 = vmul.f32 1.0, %v768
    %v770 = vrcp.pop %v739
    %v771 = vmul.f32 %v739, %v770
    %v772 = vsub.f32 1.0, %v771
    %v773 = vmul.f32 %v770, %v772
    %v774 = vadd.f32 %v770, %v773
    %vm775 = vweird.f32 %v739
    %vm776 = vweird.f32 %v770
    %vm777 = vmor %vm775, %vm776
    %v778 = vsel %vm777, %v770, %v774
    %v779 = vand.u32 2147483647, %v739
    %vm780 = vcmp.eq.f32.partialorder %v779, 8.507059e+37
    %v781 = vand.u32 %v739, 2147483648
    %v782 = vor.u32 1.1754944e-38, %v781
    %v783 = vsel %vm780, %v782, %v778
    %v784 = vmul.f32 1.0, %v783
    %v785 = vtanh.pop %v727
    %v786 = vmul.f32 %v754, %v785
    %v787 = vmul.f32 %v769, %v636
    %v788 = vadd.f32 %v787, %v786
    %v789 = vtanh.pop %v788
    %v790 = vmul.f32 %v784, %v789
    %v791 = vmax.f32 %v639, %v790
    %v792 = vld [vmem:[#allocation2 + $0x80] sm:$0xff]
    %v793 = vld [vmem:[#allocation2 + $0x88] sm:$0xff]
    %v794 = vld [vmem:[#allocation2 + $0x90] sm:$0xff]
    %v795 = vld [vmem:[#allocation2 + $0x98] sm:$0xff]
    %796 = vmatpush.msra.mxu0 %v287
    %797 = vmatpush.msra.mxu0 %v283
    %798 = vmatpush.msra.mxu0 %v279
    %799 = vmatpush.msra.mxu0 %v275
    %800 = vmatpush.msra.mxu0 %v271
    %801 = vmatpush.msra.mxu0 %v267
    %802 = vmatpush.msra.mxu0 %v263
    %803 = vmatpush.msra.mxu0 %v259
    %804 = vmatpush.msra.mxu0 %v255
    %805 = vmatpush.msra.mxu0 %v251
    %806 = vmatpush.msra.mxu0 %v247
    %807 = vmatpush.msra.mxu0 %v243
    %808 = vmatpush.msra.mxu0 %v239
    %809 = vmatpush.msra.mxu0 %v235
    %810 = vmatpush.msra.mxu0 %v231
    %811 = vmatpush.msra.mxu0 %v227
    %812 = vmatmul.f32.gmra.mxu0 %v790
    %v813 = vpop.f32.mrf.mxu0
    %v814 = vadd.f32 0.0, %v813
    %815 = vdwg.mxu0
    %816 = vmatpush.msra.mxu0 %v288
    %817 = vmatpush.msra.mxu0 %v284
    %818 = vmatpush.msra.mxu0 %v280
    %819 = vmatpush.msra.mxu0 %v276
    %820 = vmatpush.msra.mxu0 %v272
    %821 = vmatpush.msra.mxu0 %v268
    %822 = vmatpush.msra.mxu0 %v264
    %823 = vmatpush.msra.mxu0 %v260
    %824 = vmatpush.msra.mxu0 %v256
    %825 = vmatpush.msra.mxu0 %v252
    %826 = vmatpush.msra.mxu0 %v248
    %827 = vmatpush.msra.mxu0 %v244
    %828 = vmatpush.msra.mxu0 %v240
    %829 = vmatpush.msra.mxu0 %v236
    %830 = vmatpush.msra.mxu0 %v232
    %831 = vmatpush.msra.mxu0 %v228
    %832 = vmatmul.f32.gmra.mxu0 %v790
    %v833 = vpop.f32.mrf.mxu0
    %v834 = vadd.f32 0.0, %v833
    %835 = vdwg.mxu0
    %836 = vmatpush.msra.mxu0 %v289
    %837 = vmatpush.msra.mxu0 %v285
    %838 = vmatpush.msra.mxu0 %v281
    %839 = vmatpush.msra.mxu0 %v277
    %840 = vmatpush.msra.mxu0 %v273
    %841 = vmatpush.msra.mxu0 %v269
    %842 = vmatpush.msra.mxu0 %v265
    %843 = vmatpush.msra.mxu0 %v261
    %844 = vmatpush.msra.mxu0 %v257
    %845 = vmatpush.msra.mxu0 %v253
    %846 = vmatpush.msra.mxu0 %v249
    %847 = vmatpush.msra.mxu0 %v245
    %848 = vmatpush.msra.mxu0 %v241
    %849 = vmatpush.msra.mxu0 %v237
    %850 = vmatpush.msra.mxu0 %v233
    %851 = vmatpush.msra.mxu0 %v229
    %852 = vmatmul.f32.gmra.mxu0 %v790
    %v853 = vpop.f32.mrf.mxu0
    %v854 = vadd.f32 0.0, %v853
    %855 = vdwg.mxu0
    %856 = vmatpush.msra.mxu0 %v290
    %857 = vmatpush.msra.mxu0 %v286
    %858 = vmatpush.msra.mxu0 %v282
    %859 = vmatpush.msra.mxu0 %v278
    %860 = vmatpush.msra.mxu0 %v274
    %861 = vmatpush.msra.mxu0 %v270
    %862 = vmatpush.msra.mxu0 %v266
    %863 = vmatpush.msra.mxu0 %v262
    %864 = vmatpush.msra.mxu0 %v258
    %865 = vmatpush.msra.mxu0 %v254
    %866 = vmatpush.msra.mxu0 %v250
    %867 = vmatpush.msra.mxu0 %v246
    %868 = vmatpush.msra.mxu0 %v242
    %869 = vmatpush.msra.mxu0 %v238
    %870 = vmatpush.msra.mxu0 %v234
    %871 = vmatpush.msra.mxu0 %v230
    %872 = vmatmul.f32.gmra.mxu0 %v790
    %v873 = vpop.f32.mrf.mxu0
    %v874 = vadd.f32 0.0, %v873
    %875 = vdwg.mxu0
    %v876 = vadd.f32 %v792, %v814
    %v877 = vadd.f32 %v793, %v834
    %v878 = vadd.f32 %v794, %v854
    %v879 = vadd.f32 %v795, %v874
    %v880 = vxor.u32 %v876, 2147483648
    %v881 = vxor.u32 %v877, 2147483648
    %v882 = vxor.u32 %v878, 2147483648
    %v883 = vmul.f32 %v880, 1.442695
    %v884 = vpow.pop %v883
    %v885 = vmul.f32 %v881, 1.442695
    %v886 = vpow.pop %v885
    %v887 = vmul.f32 %v882, 1.442695
    %v888 = vpow.pop %v887
    %v889 = vadd.f32 %v884, 1.0
    %v890 = vadd.f32 %v886, 1.0
    %v891 = vadd.f32 %v888, 1.0
    %v892 = vrcp.pop %v889
    %v893 = vmul.f32 %v889, %v892
    %v894 = vsub.f32 1.0, %v893
    %v895 = vmul.f32 %v892, %v894
    %v896 = vadd.f32 %v892, %v895
    %vm897 = vweird.f32 %v889
    %vm898 = vweird.f32 %v892
    %vm899 = vmor %vm897, %vm898
    %v900 = vsel %vm899, %v892, %v896
    %v901 = vand.u32 2147483647, %v889
    %vm902 = vcmp.eq.f32.partialorder %v901, 8.507059e+37
    %v903 = vand.u32 %v889, 2147483648
    %v904 = vor.u32 1.1754944e-38, %v903
    %v905 = vsel %vm902, %v904, %v900
    %v906 = vmul.f32 1.0, %v905
    %v907 = vrcp.pop %v890
    %v908 = vmul.f32 %v890, %v907
    %v909 = vsub.f32 1.0, %v908
    %v910 = vmul.f32 %v907, %v909
    %v911 = vadd.f32 %v907, %v910
    %vm912 = vweird.f32 %v890
    %vm913 = vweird.f32 %v907
    %vm914 = vmor %vm912, %vm913
    %v915 = vsel %vm914, %v907, %v911
    %v916 = vand.u32 2147483647, %v890
    %vm917 = vcmp.eq.f32.partialorder %v916, 8.507059e+37
    %v918 = vand.u32 %v890, 2147483648
    %v919 = vor.u32 1.1754944e-38, %v918
    %v920 = vsel %vm917, %v919, %v915
    %v921 = vmul.f32 1.0, %v920
    %v922 = vrcp.pop %v891
    %v923 = vmul.f32 %v891, %v922
    %v924 = vsub.f32 1.0, %v923
    %v925 = vmul.f32 %v922, %v924
    %v926 = vadd.f32 %v922, %v925
    %vm927 = vweird.f32 %v891
    %vm928 = vweird.f32 %v922
    %vm929 = vmor %vm927, %vm928
    %v930 = vsel %vm929, %v922, %v926
    %v931 = vand.u32 2147483647, %v891
    %vm932 = vcmp.eq.f32.partialorder %v931, 8.507059e+37
    %v933 = vand.u32 %v891, 2147483648
    %v934 = vor.u32 1.1754944e-38, %v933
    %v935 = vsel %vm932, %v934, %v930
    %v936 = vmul.f32 1.0, %v935
    %v937 = vtanh.pop %v879
    %v938 = vmul.f32 %v906, %v937
    %v939 = vmul.f32 %v921, %v788
    %v940 = vadd.f32 %v939, %v938
    %v941 = vtanh.pop %v940
    %v942 = vmul.f32 %v936, %v941
    %v943 = vmax.f32 %v791, %v942
    %v944 = vld [vmem:[#allocation2 + $0xa0] sm:$0xff]
    %v945 = vld [vmem:[#allocation2 + $0xa8] sm:$0xff]
    %v946 = vld [vmem:[#allocation2 + $0xb0] sm:$0xff]
    %v947 = vld [vmem:[#allocation2 + $0xb8] sm:$0xff]
    %948 = vmatpush.msra.mxu0 %v287
    %949 = vmatpush.msra.mxu0 %v283
    %950 = vmatpush.msra.mxu0 %v279
    %951 = vmatpush.msra.mxu0 %v275
    %952 = vmatpush.msra.mxu0 %v271
    %953 = vmatpush.msra.mxu0 %v267
    %954 = vmatpush.msra.mxu0 %v263
    %955 = vmatpush.msra.mxu0 %v259
    %956 = vmatpush.msra.mxu0 %v255
    %957 = vmatpush.msra.mxu0 %v251
    %958 = vmatpush.msra.mxu0 %v247
    %959 = vmatpush.msra.mxu0 %v243
    %960 = vmatpush.msra.mxu0 %v239
    %961 = vmatpush.msra.mxu0 %v235
    %962 = vmatpush.msra.mxu0 %v231
    %963 = vmatpush.msra.mxu0 %v227
    %964 = vmatmul.f32.gmra.mxu0 %v942
    %v965 = vpop.f32.mrf.mxu0
    %v966 = vadd.f32 0.0, %v965
    %967 = vdwg.mxu0
    %968 = vmatpush.msra.mxu0 %v288
    %969 = vmatpush.msra.mxu0 %v284
    %970 = vmatpush.msra.mxu0 %v280
    %971 = vmatpush.msra.mxu0 %v276
    %972 = vmatpush.msra.mxu0 %v272
    %973 = vmatpush.msra.mxu0 %v268
    %974 = vmatpush.msra.mxu0 %v264
    %975 = vmatpush.msra.mxu0 %v260
    %976 = vmatpush.msra.mxu0 %v256
    %977 = vmatpush.msra.mxu0 %v252
    %978 = vmatpush.msra.mxu0 %v248
    %979 = vmatpush.msra.mxu0 %v244
    %980 = vmatpush.msra.mxu0 %v240
    %981 = vmatpush.msra.mxu0 %v236
    %982 = vmatpush.msra.mxu0 %v232
    %983 = vmatpush.msra.mxu0 %v228
    %984 = vmatmul.f32.gmra.mxu0 %v942
    %v985 = vpop.f32.mrf.mxu0
    %v986 = vadd.f32 0.0, %v985
    %987 = vdwg.mxu0
    %988 = vmatpush.msra.mxu0 %v289
    %989 = vmatpush.msra.mxu0 %v285
    %990 = vmatpush.msra.mxu0 %v281
    %991 = vmatpush.msra.mxu0 %v277
    %992 = vmatpush.msra.mxu0 %v273
    %993 = vmatpush.msra.mxu0 %v269
    %994 = vmatpush.msra.mxu0 %v265
    %995 = vmatpush.msra.mxu0 %v261
    %996 = vmatpush.msra.mxu0 %v257
    %997 = vmatpush.msra.mxu0 %v253
    %998 = vmatpush.msra.mxu0 %v249
    %999 = vmatpush.msra.mxu0 %v245
    %1000 = vmatpush.msra.mxu0 %v241
    %1001 = vmatpush.msra.mxu0 %v237
    %1002 = vmatpush.msra.mxu0 %v233
    %1003 = vmatpush.msra.mxu0 %v229
    %1004 = vmatmul.f32.gmra.mxu0 %v942
    %v1005 = vpop.f32.mrf.mxu0
    %v1006 = vadd.f32 0.0, %v1005
    %1007 = vdwg.mxu0
    %1008 = vmatpush.msra.mxu0 %v290
    %1009 = vmatpush.msra.mxu0 %v286
    %1010 = vmatpush.msra.mxu0 %v282
    %1011 = vmatpush.msra.mxu0 %v278
    %1012 = vmatpush.msra.mxu0 %v274
    %1013 = vmatpush.msra.mxu0 %v270
    %1014 = vmatpush.msra.mxu0 %v266
    %1015 = vmatpush.msra.mxu0 %v262
    %1016 = vmatpush.msra.mxu0 %v258
    %1017 = vmatpush.msra.mxu0 %v254
    %1018 = vmatpush.msra.mxu0 %v250
    %1019 = vmatpush.msra.mxu0 %v246
    %1020 = vmatpush.msra.mxu0 %v242
    %1021 = vmatpush.msra.mxu0 %v238
    %1022 = vmatpush.msra.mxu0 %v234
    %1023 = vmatpush.msra.mxu0 %v230
    %1024 = vmatmul.f32.gmra.mxu0 %v942
    %v1025 = vpop.f32.mrf.mxu0
    %v1026 = vadd.f32 0.0, %v1025
    %1027 = vdwg.mxu0
    %v1028 = vadd.f32 %v944, %v966
    %v1029 = vadd.f32 %v945, %v986
    %v1030 = vadd.f32 %v946, %v1006
    %v1031 = vadd.f32 %v947, %v1026
    %v1032 = vxor.u32 %v1028, 2147483648
    %v1033 = vxor.u32 %v1029, 2147483648
    %v1034 = vxor.u32 %v1030, 2147483648
    %v1035 = vmul.f32 %v1032, 1.442695
    %v1036 = vpow.pop %v1035
    %v1037 = vmul.f32 %v1033, 1.442695
    %v1038 = vpow.pop %v1037
    %v1039 = vmul.f32 %v1034, 1.442695
    %v1040 = vpow.pop %v1039
    %v1041 = vadd.f32 %v1036, 1.0
    %v1042 = vadd.f32 %v1038, 1.0
    %v1043 = vadd.f32 %v1040, 1.0
    %v1044 = vrcp.pop %v1041
    %v1045 = vmul.f32 %v1041, %v1044
    %v1046 = vsub.f32 1.0, %v1045
    %v1047 = vmul.f32 %v1044, %v1046
    %v1048 = vadd.f32 %v1044, %v1047
    %vm1049 = vweird.f32 %v1041
    %vm1050 = vweird.f32 %v1044
    %vm1051 = vmor %vm1049, %vm1050
    %v1052 = vsel %vm1051, %v1044, %v1048
    %v1053 = vand.u32 2147483647, %v1041
    %vm1054 = vcmp.eq.f32.partialorder %v1053, 8.507059e+37
    %v1055 = vand.u32 %v1041, 2147483648
    %v1056 = vor.u32 1.1754944e-38, %v1055
    %v1057 = vsel %vm1054, %v1056, %v1052
    %v1058 = vmul.f32 1.0, %v1057
    %v1059 = vrcp.pop %v1042
    %v1060 = vmul.f32 %v1042, %v1059
    %v1061 = vsub.f32 1.0, %v1060
    %v1062 = vmul.f32 %v1059, %v1061
    %v1063 = vadd.f32 %v1059, %v1062
    %vm1064 = vweird.f32 %v1042
    %vm1065 = vweird.f32 %v1059
    %vm1066 = vmor %vm1064, %vm1065
    %v1067 = vsel %vm1066, %v1059, %v1063
    %v1068 = vand.u32 2147483647, %v1042
    %vm1069 = vcmp.eq.f32.partialorder %v1068, 8.507059e+37
    %v1070 = vand.u32 %v1042, 2147483648
    %v1071 = vor.u32 1.1754944e-38, %v1070
    %v1072 = vsel %vm1069, %v1071, %v1067
    %v1073 = vmul.f32 1.0, %v1072
    %v1074 = vrcp.pop %v1043
    %v1075 = vmul.f32 %v1043, %v1074
    %v1076 = vsub.f32 1.0, %v1075
    %v1077 = vmul.f32 %v1074, %v1076
    %v1078 = vadd.f32 %v1074, %v1077
    %vm1079 = vweird.f32 %v1043
    %vm1080 = vweird.f32 %v1074
    %vm1081 = vmor %vm1079, %vm1080
    %v1082 = vsel %vm1081, %v1074, %v1078
    %v1083 = vand.u32 2147483647, %v1043
    %vm1084 = vcmp.eq.f32.partialorder %v1083, 8.507059e+37
    %v1085 = vand.u32 %v1043, 2147483648
    %v1086 = vor.u32 1.1754944e-38, %v1085
    %v1087 = vsel %vm1084, %v1086, %v1082
    %v1088 = vmul.f32 1.0, %v1087
    %v1089 = vtanh.pop %v1031
    %v1090 = vmul.f32 %v1058, %v1089
    %v1091 = vmul.f32 %v1073, %v940
    %v1092 = vadd.f32 %v1091, %v1090
    %v1093 = vtanh.pop %v1092
    %v1094 = vmul.f32 %v1088, %v1093
    %v1095 = vmax.f32 %v943, %v1094
    %v1096 = vld [vmem:[#allocation2 + $0xc0] sm:$0xff]
    %v1097 = vld [vmem:[#allocation2 + $0xc8] sm:$0xff]
    %v1098 = vld [vmem:[#allocation2 + $0xd0] sm:$0xff]
    %v1099 = vld [vmem:[#allocation2 + $0xd8] sm:$0xff]
    %1100 = vmatpush.msra.mxu0 %v287
    %1101 = vmatpush.msra.mxu0 %v283
    %1102 = vmatpush.msra.mxu0 %v279
    %1103 = vmatpush.msra.mxu0 %v275
    %1104 = vmatpush.msra.mxu0 %v271
    %1105 = vmatpush.msra.mxu0 %v267
    %1106 = vmatpush.msra.mxu0 %v263
    %1107 = vmatpush.msra.mxu0 %v259
    %1108 = vmatpush.msra.mxu0 %v255
    %1109 = vmatpush.msra.mxu0 %v251
    %1110 = vmatpush.msra.mxu0 %v247
    %1111 = vmatpush.msra.mxu0 %v243
    %1112 = vmatpush.msra.mxu0 %v239
    %1113 = vmatpush.msra.mxu0 %v235
    %1114 = vmatpush.msra.mxu0 %v231
    %1115 = vmatpush.msra.mxu0 %v227
    %1116 = vmatmul.f32.gmra.mxu0 %v1094
    %v1117 = vpop.f32.mrf.mxu0
    %v1118 = vadd.f32 0.0, %v1117
    %1119 = vdwg.mxu0
    %1120 = vmatpush.msra.mxu0 %v288
    %1121 = vmatpush.msra.mxu0 %v284
    %1122 = vmatpush.msra.mxu0 %v280
    %1123 = vmatpush.msra.mxu0 %v276
    %1124 = vmatpush.msra.mxu0 %v272
    %1125 = vmatpush.msra.mxu0 %v268
    %1126 = vmatpush.msra.mxu0 %v264
    %1127 = vmatpush.msra.mxu0 %v260
    %1128 = vmatpush.msra.mxu0 %v256
    %1129 = vmatpush.msra.mxu0 %v252
    %1130 = vmatpush.msra.mxu0 %v248
    %1131 = vmatpush.msra.mxu0 %v244
    %1132 = vmatpush.msra.mxu0 %v240
    %1133 = vmatpush.msra.mxu0 %v236
    %1134 = vmatpush.msra.mxu0 %v232
    %1135 = vmatpush.msra.mxu0 %v228
    %1136 = vmatmul.f32.gmra.mxu0 %v1094
    %v1137 = vpop.f32.mrf.mxu0
    %v1138 = vadd.f32 0.0, %v1137
    %1139 = vdwg.mxu0
    %1140 = vmatpush.msra.mxu0 %v289
    %1141 = vmatpush.msra.mxu0 %v285
    %1142 = vmatpush.msra.mxu0 %v281
    %1143 = vmatpush.msra.mxu0 %v277
    %1144 = vmatpush.msra.mxu0 %v273
    %1145 = vmatpush.msra.mxu0 %v269
    %1146 = vmatpush.msra.mxu0 %v265
    %1147 = vmatpush.msra.mxu0 %v261
    %1148 = vmatpush.msra.mxu0 %v257
    %1149 = vmatpush.msra.mxu0 %v253
    %1150 = vmatpush.msra.mxu0 %v249
    %1151 = vmatpush.msra.mxu0 %v245
    %1152 = vmatpush.msra.mxu0 %v241
    %1153 = vmatpush.msra.mxu0 %v237
    %1154 = vmatpush.msra.mxu0 %v233
    %1155 = vmatpush.msra.mxu0 %v229
    %1156 = vmatmul.f32.gmra.mxu0 %v1094
    %v1157 = vpop.f32.mrf.mxu0
    %v1158 = vadd.f32 0.0, %v1157
    %1159 = vdwg.mxu0
    %1160 = vmatpush.msra.mxu0 %v290
    %1161 = vmatpush.msra.mxu0 %v286
    %1162 = vmatpush.msra.mxu0 %v282
    %1163 = vmatpush.msra.mxu0 %v278
    %1164 = vmatpush.msra.mxu0 %v274
    %1165 = vmatpush.msra.mxu0 %v270
    %1166 = vmatpush.msra.mxu0 %v266
    %1167 = vmatpush.msra.mxu0 %v262
    %1168 = vmatpush.msra.mxu0 %v258
    %1169 = vmatpush.msra.mxu0 %v254
    %1170 = vmatpush.msra.mxu0 %v250
    %1171 = vmatpush.msra.mxu0 %v246
    %1172 = vmatpush.msra.mxu0 %v242
    %1173 = vmatpush.msra.mxu0 %v238
    %1174 = vmatpush.msra.mxu0 %v234
    %1175 = vmatpush.msra.mxu0 %v230
    %1176 = vmatmul.f32.gmra.mxu0 %v1094
    %v1177 = vpop.f32.mrf.mxu0
    %v1178 = vadd.f32 0.0, %v1177
    %1179 = vdwg.mxu0
    %v1180 = vadd.f32 %v1096, %v1118
    %v1181 = vadd.f32 %v1097, %v1138
    %v1182 = vadd.f32 %v1098, %v1158
    %v1183 = vadd.f32 %v1099, %v1178
    %v1184 = vxor.u32 %v1180, 2147483648
    %v1185 = vxor.u32 %v1181, 2147483648
    %v1186 = vxor.u32 %v1182, 2147483648
    %v1187 = vmul.f32 %v1184, 1.442695
    %v1188 = vpow.pop %v1187
    %v1189 = vmul.f32 %v1185, 1.442695
    %v1190 = vpow.pop %v1189
    %v1191 = vmul.f32 %v1186, 1.442695
    %v1192 = vpow.pop %v1191
    %v1193 = vadd.f32 %v1188, 1.0
    %v1194 = vadd.f32 %v1190, 1.0
    %v1195 = vadd.f32 %v1192, 1.0
    %v1196 = vrcp.pop %v1193
    %v1197 = vmul.f32 %v1193, %v1196
    %v1198 = vsub.f32 1.0, %v1197
    %v1199 = vmul.f32 %v1196, %v1198
    %v1200 = vadd.f32 %v1196, %v1199
    %vm1201 = vweird.f32 %v1193
    %vm1202 = vweird.f32 %v1196
    %vm1203 = vmor %vm1201, %vm1202
    %v1204 = vsel %vm1203, %v1196, %v1200
    %v1205 = vand.u32 2147483647, %v1193
    %vm1206 = vcmp.eq.f32.partialorder %v1205, 8.507059e+37
    %v1207 = vand.u32 %v1193, 2147483648
    %v1208 = vor.u32 1.1754944e-38, %v1207
    %v1209 = vsel %vm1206, %v1208, %v1204
    %v1210 = vmul.f32 1.0, %v1209
    %v1211 = vrcp.pop %v1194
    %v1212 = vmul.f32 %v1194, %v1211
    %v1213 = vsub.f32 1.0, %v1212
    %v1214 = vmul.f32 %v1211, %v1213
    %v1215 = vadd.f32 %v1211, %v1214
    %vm1216 = vweird.f32 %v1194
    %vm1217 = vweird.f32 %v1211
    %vm1218 = vmor %vm1216, %vm1217
    %v1219 = vsel %vm1218, %v1211, %v1215
    %v1220 = vand.u32 2147483647, %v1194
    %vm1221 = vcmp.eq.f32.partialorder %v1220, 8.507059e+37
    %v1222 = vand.u32 %v1194, 2147483648
    %v1223 = vor.u32 1.1754944e-38, %v1222
    %v1224 = vsel %vm1221, %v1223, %v1219
    %v1225 = vmul.f32 1.0, %v1224
    %v1226 = vrcp.pop %v1195
    %v1227 = vmul.f32 %v1195, %v1226
    %v1228 = vsub.f32 1.0, %v1227
    %v1229 = vmul.f32 %v1226, %v1228
    %v1230 = vadd.f32 %v1226, %v1229
    %vm1231 = vweird.f32 %v1195
    %vm1232 = vweird.f32 %v1226
    %vm1233 = vmor %vm1231, %vm1232
    %v1234 = vsel %vm1233, %v1226, %v1230
    %v1235 = vand.u32 2147483647, %v1195
    %vm1236 = vcmp.eq.f32.partialorder %v1235, 8.507059e+37
    %v1237 = vand.u32 %v1195, 2147483648
    %v1238 = vor.u32 1.1754944e-38, %v1237
    %v1239 = vsel %vm1236, %v1238, %v1234
    %v1240 = vmul.f32 1.0, %v1239
    %v1241 = vtanh.pop %v1183
    %v1242 = vmul.f32 %v1210, %v1241
    %v1243 = vmul.f32 %v1225, %v1092
    %v1244 = vadd.f32 %v1243, %v1242
    %v1245 = vtanh.pop %v1244
    %v1246 = vmul.f32 %v1240, %v1245
    %v1247 = vmax.f32 %v1095, %v1246
    %v1248 = vld [vmem:[#allocation2 + $0xe0] sm:$0xff]
    %v1249 = vld [vmem:[#allocation2 + $0xe8] sm:$0xff]
    %v1250 = vld [vmem:[#allocation2 + $0xf0] sm:$0xff]
    %v1251 = vld [vmem:[#allocation2 + $0xf8] sm:$0xff]
    %1252 = vmatpush.msra.mxu0 %v287
    %1253 = vmatpush.msra.mxu0 %v283
    %1254 = vmatpush.msra.mxu0 %v279
    %1255 = vmatpush.msra.mxu0 %v275
    %1256 = vmatpush.msra.mxu0 %v271
    %1257 = vmatpush.msra.mxu0 %v267
    %1258 = vmatpush.msra.mxu0 %v263
    %1259 = vmatpush.msra.mxu0 %v259
    %1260 = vmatpush.msra.mxu0 %v255
    %1261 = vmatpush.msra.mxu0 %v251
    %1262 = vmatpush.msra.mxu0 %v247
    %1263 = vmatpush.msra.mxu0 %v243
    %1264 = vmatpush.msra.mxu0 %v239
    %1265 = vmatpush.msra.mxu0 %v235
    %1266 = vmatpush.msra.mxu0 %v231
    %1267 = vmatpush.msra.mxu0 %v227
    %1268 = vmatmul.f32.gmra.mxu0 %v1246
    %v1269 = vpop.f32.mrf.mxu0
    %v1270 = vadd.f32 0.0, %v1269
    %1271 = vdwg.mxu0
    %1272 = vmatpush.msra.mxu0 %v288
    %1273 = vmatpush.msra.mxu0 %v284
    %1274 = vmatpush.msra.mxu0 %v280
    %1275 = vmatpush.msra.mxu0 %v276
    %1276 = vmatpush.msra.mxu0 %v272
    %1277 = vmatpush.msra.mxu0 %v268
    %1278 = vmatpush.msra.mxu0 %v264
    %1279 = vmatpush.msra.mxu0 %v260
    %1280 = vmatpush.msra.mxu0 %v256
    %1281 = vmatpush.msra.mxu0 %v252
    %1282 = vmatpush.msra.mxu0 %v248
    %1283 = vmatpush.msra.mxu0 %v244
    %1284 = vmatpush.msra.mxu0 %v240
    %1285 = vmatpush.msra.mxu0 %v236
    %1286 = vmatpush.msra.mxu0 %v232
    %1287 = vmatpush.msra.mxu0 %v228
    %1288 = vmatmul.f32.gmra.mxu0 %v1246
    %v1289 = vpop.f32.mrf.mxu0
    %v1290 = vadd.f32 0.0, %v1289
    %1291 = vdwg.mxu0
    %1292 = vmatpush.msra.mxu0 %v289
    %1293 = vmatpush.msra.mxu0 %v285
    %1294 = vmatpush.msra.mxu0 %v281
    %1295 = vmatpush.msra.mxu0 %v277
    %1296 = vmatpush.msra.mxu0 %v273
    %1297 = vmatpush.msra.mxu0 %v269
    %1298 = vmatpush.msra.mxu0 %v265
    %1299 = vmatpush.msra.mxu0 %v261
    %1300 = vmatpush.msra.mxu0 %v257
    %1301 = vmatpush.msra.mxu0 %v253
    %1302 = vmatpush.msra.mxu0 %v249
    %1303 = vmatpush.msra.mxu0 %v245
    %1304 = vmatpush.msra.mxu0 %v241
    %1305 = vmatpush.msra.mxu0 %v237
    %1306 = vmatpush.msra.mxu0 %v233
    %1307 = vmatpush.msra.mxu0 %v229
    %1308 = vmatmul.f32.gmra.mxu0 %v1246
    %v1309 = vpop.f32.mrf.mxu0
    %v1310 = vadd.f32 0.0, %v1309
    %1311 = vdwg.mxu0
    %1312 = vmatpush.msra.mxu0 %v290
    %1313 = vmatpush.msra.mxu0 %v286
    %1314 = vmatpush.msra.mxu0 %v282
    %1315 = vmatpush.msra.mxu0 %v278
    %1316 = vmatpush.msra.mxu0 %v274
    %1317 = vmatpush.msra.mxu0 %v270
    %1318 = vmatpush.msra.mxu0 %v266
    %1319 = vmatpush.msra.mxu0 %v262
    %1320 = vmatpush.msra.mxu0 %v258
    %1321 = vmatpush.msra.mxu0 %v254
    %1322 = vmatpush.msra.mxu0 %v250
    %1323 = vmatpush.msra.mxu0 %v246
    %1324 = vmatpush.msra.mxu0 %v242
    %1325 = vmatpush.msra.mxu0 %v238
    %1326 = vmatpush.msra.mxu0 %v234
    %1327 = vmatpush.msra.mxu0 %v230
    %1328 = vmatmul.f32.gmra.mxu0 %v1246
    %v1329 = vpop.f32.mrf.mxu0
    %v1330 = vadd.f32 0.0, %v1329
    %1331 = vdwg.mxu0
    %v1332 = vadd.f32 %v1248, %v1270
    %v1333 = vadd.f32 %v1249, %v1290
    %v1334 = vadd.f32 %v1250, %v1310
    %v1335 = vadd.f32 %v1251, %v1330
    %v1336 = vxor.u32 %v1332, 2147483648
    %v1337 = vxor.u32 %v1333, 2147483648
    %v1338 = vxor.u32 %v1334, 2147483648
    %v1339 = vmul.f32 %v1336, 1.442695
    %v1340 = vpow.pop %v1339
    %v1341 = vmul.f32 %v1337, 1.442695
    %v1342 = vpow.pop %v1341
    %v1343 = vmul.f32 %v1338, 1.442695
    %v1344 = vpow.pop %v1343
    %v1345 = vadd.f32 %v1340, 1.0
    %v1346 = vadd.f32 %v1342, 1.0
    %v1347 = vadd.f32 %v1344, 1.0
    %v1348 = vrcp.pop %v1345
    %v1349 = vmul.f32 %v1345, %v1348
    %v1350 = vsub.f32 1.0, %v1349
    %v1351 = vmul.f32 %v1348, %v1350
    %v1352 = vadd.f32 %v1348, %v1351
    %vm1353 = vweird.f32 %v1345
    %vm1354 = vweird.f32 %v1348
    %vm1355 = vmor %vm1353, %vm1354
    %v1356 = vsel %vm1355, %v1348, %v1352
    %v1357 = vand.u32 2147483647, %v1345
    %vm1358 = vcmp.eq.f32.partialorder %v1357, 8.507059e+37
    %v1359 = vand.u32 %v1345, 2147483648
    %v1360 = vor.u32 1.1754944e-38, %v1359
    %v1361 = vsel %vm1358, %v1360, %v1356
    %v1362 = vmul.f32 1.0, %v1361
    %v1363 = vrcp.pop %v1346
    %v1364 = vmul.f32 %v1346, %v1363
    %v1365 = vsub.f32 1.0, %v1364
    %v1366 = vmul.f32 %v1363, %v1365
    %v1367 = vadd.f32 %v1363, %v1366
    %vm1368 = vweird.f32 %v1346
    %vm1369 = vweird.f32 %v1363
    %vm1370 = vmor %vm1368, %vm1369
    %v1371 = vsel %vm1370, %v1363, %v1367
    %v1372 = vand.u32 2147483647, %v1346
    %vm1373 = vcmp.eq.f32.partialorder %v1372, 8.507059e+37
    %v1374 = vand.u32 %v1346, 2147483648
    %v1375 = vor.u32 1.1754944e-38, %v1374
    %v1376 = vsel %vm1373, %v1375, %v1371
    %v1377 = vmul.f32 1.0, %v1376
    %v1378 = vrcp.pop %v1347
    %v1379 = vmul.f32 %v1347, %v1378
    %v1380 = vsub.f32 1.0, %v1379
    %v1381 = vmul.f32 %v1378, %v1380
    %v1382 = vadd.f32 %v1378, %v1381
    %vm1383 = vweird.f32 %v1347
    %vm1384 = vweird.f32 %v1378
    %vm1385 = vmor %vm1383, %vm1384
    %v1386 = vsel %vm1385, %v1378, %v1382
    %v1387 = vand.u32 2147483647, %v1347
    %vm1388 = vcmp.eq.f32.partialorder %v1387, 8.507059e+37
    %v1389 = vand.u32 %v1347, 2147483648
    %v1390 = vor.u32 1.1754944e-38, %v1389
    %v1391 = vsel %vm1388, %v1390, %v1386
    %v1392 = vmul.f32 1.0, %v1391
    %v1393 = vtanh.pop %v1335
    %v1394 = vmul.f32 %v1362, %v1393
    %v1395 = vmul.f32 %v1377, %v1244
    %v1396 = vadd.f32 %v1395, %v1394
    %v1397 = vtanh.pop %v1396
    %v1398 = vmul.f32 %v1392, %v1397
    %v1399 = vmax.f32 %v1247, %v1398
    %v1400 = vtanh.pop %v1399
    %v1401 = vld [vmem:[#allocation9] sm:$0xff]
    %v1402 = vld [vmem:[#allocation9 + $0x8] sm:$0xff]
    %v1403 = vld [vmem:[#allocation9 + $0x10] sm:$0xff]
    %v1404 = vld [vmem:[#allocation9 + $0x18] sm:$0xff]
    %v1405 = vld [vmem:[#allocation9 + $0x20] sm:$0xff]
    %v1406 = vld [vmem:[#allocation9 + $0x28] sm:$0xff]
    %v1407 = vld [vmem:[#allocation9 + $0x30] sm:$0xff]
    %v1408 = vld [vmem:[#allocation9 + $0x38] sm:$0xff]
    %v1409 = vld [vmem:[#allocation9 + $0x40] sm:$0xff]
    %v1410 = vld [vmem:[#allocation9 + $0x48] sm:$0xff]
    %v1411 = vld [vmem:[#allocation9 + $0x50] sm:$0xff]
    %v1412 = vld [vmem:[#allocation9 + $0x58] sm:$0xff]
    %v1413 = vld [vmem:[#allocation9 + $0x60] sm:$0xff]
    %v1414 = vld [vmem:[#allocation9 + $0x68] sm:$0xff]
    %v1415 = vld [vmem:[#allocation9 + $0x70] sm:$0xff]
    %v1416 = vld [vmem:[#allocation9 + $0x78] sm:$0xff]
    %v1417 = vld [vmem:[%s4] sm:$0x1]
    %v1419 = vperm.slane %v1417, 0
    %1421 = vmatpush.msra.mxu0 %v1416
    %1422 = vmatpush.msra.mxu0 %v1415
    %1423 = vmatpush.msra.mxu0 %v1414
    %1424 = vmatpush.msra.mxu0 %v1413
    %1425 = vmatpush.msra.mxu0 %v1412
    %1426 = vmatpush.msra.mxu0 %v1411
    %1427 = vmatpush.msra.mxu0 %v1410
    %1428 = vmatpush.msra.mxu0 %v1409
    %1429 = vmatpush.msra.mxu0 %v1408
    %1430 = vmatpush.msra.mxu0 %v1407
    %1431 = vmatpush.msra.mxu0 %v1406
    %1432 = vmatpush.msra.mxu0 %v1405
    %1433 = vmatpush.msra.mxu0 %v1404
    %1434 = vmatpush.msra.mxu0 %v1403
    %1435 = vmatpush.msra.mxu0 %v1402
    %1436 = vmatpush.msra.mxu0 %v1401
    %1437 = vmatmul.f32.gmra.mxu0 %v1400
    %v1438 = vpop.f32.mrf.mxu0
    %v1439 = vadd.f32 %v1419, %v1438
    %1440 = vdwg.mxu0
    %1441 = vst [vmem:[%s5] sm:$0xff] %v1439
    // Predicated region
    $region38: #{lstm_forward.1} parent=1 // pred_check
      _
    $region39: #{lstm_forward.1} parent=1 // pred_check_branch
      %1443 = sbr.rel (0) target = $region41
    $region40: #{lstm_forward.1} parent=1 // pred_region
      _
    $region41: #{lstm_forward.1} parent=1 // pred_fallthru
      _
    // Predicated region
    $region42: #{lstm_forward.1} parent=1 // pred_check
      _
    $region43: #{lstm_forward.1} parent=1 // pred_check_branch
      %1445 = sbr.rel (0) target = $region45
    $region44: #{lstm_forward.1} parent=1 // pred_region
      _
    $region45: #{lstm_forward.1} parent=1 // pred_fallthru
      _
    %1446 = vsyncpa [#allocation4], 1
    %1447 = vsyncpa [#allocation8], 1
    %1448 = vsyncpa [#allocation5], 1

</llo_original>
